<compile_context>
chip_gen: v5e
topology: v5e:2x2
jax: 0.10.0
libtpu: 0.0.40
codegen_flags: <defaults>
</compile_context>

<pallas_src>
import functools

import jax
import jax.numpy as jnp
from jax.experimental import pallas as pl
from jax.experimental.pallas import tpu as pltpu

COMPUTE_DTYPE = jnp.bfloat16   # MXU-native dtype on v5e/v6e/v7x; halves HBM/VMEM bytes
_BN_EPS = 1e-5


# ----------------------------------------------------------------------------
# Kernel 1: per-batch pointwise MLP (3x conv1d(k=1) + folded BN [+ ReLU]) with a
# running max over point tiles. Grid: (batch, point-tile); the point-tile axis is
# a reduction ("arbitrary") and the lane-dense (1, 1, 1024) output block is the
# resident accumulator.
# ----------------------------------------------------------------------------
def _mlp_max_kernel(x_ref, w1_ref, b1_ref, w2_ref, b2_ref, w3_ref, b3_ref,
                    out_ref, *, last_relu):
    k = pl.program_id(1)

    x = x_ref[0]                      # (tile_n, Cin)  bf16
    w1 = w1_ref[0]                    # (Cin, C1)      bf16 (per-batch when transform folded)

    # Layer 1: Cin is tiny (3) -> VPU broadcast multiply-adds in f32 (exact products),
    # instead of feeding a 3/256-wide operand to the MXU.
    h = jnp.zeros((x.shape[0], w1.shape[1]), jnp.float32)
    for i in range(x.shape[1]):
        h = h + x[:, i:i + 1].astype(jnp.float32) * w1[i:i + 1, :].astype(jnp.float32)
    h = jnp.maximum(h + b1_ref[...], 0.0)

    # Layers 2 & 3 on the MXU: bf16 operands, f32 accumulation.
    h = jnp.dot(h.astype(w2_ref.dtype), w2_ref[...],
                preferred_element_type=jnp.float32) + b2_ref[...]
    h = jnp.maximum(h, 0.0)
    h = jnp.dot(h.astype(w3_ref.dtype), w3_ref[...],
                preferred_element_type=jnp.float32) + b3_ref[...]
    if last_relu:
        h = jnp.maximum(h, 0.0)

    tile_max = jnp.max(h, axis=0, keepdims=True)          # (1, C3) f32, XLU reduce

    @pl.when(k == 0)
    def _():
        out_ref[0] = tile_max

    @pl.when(k > 0)
    def _():
        out_ref[0] = jnp.maximum(out_ref[0], tile_max)


def _pick_tile_n(n):
    # Biggest tile that divides N; 256-multiples feed the v6e/v7x MXU M dim efficiently,
    # 128 saturates v5e. 1024 keeps the f32 layer-3 activation at 4 MiB (<< 32 MiB VMEM).
    for t in (1024, 512, 256, 128, 64, 32, 16, 8):
        if n % t == 0:
            return t
    return n   # full-N block is always a legal block shape


def pointwise_mlp_max(x, w1, b1, w2, b2, w3, b3, *, last_relu, tile_n=None):
    """x: (B, N, Cin) bf16; w1: (Bw, Cin, C1), Bw in {1, B}. Returns (B, C3) f32 max over points."""
    B, N, Cin = x.shape
    Bw, _, C1 = w1.shape
    C2 = w2.shape[1]
    C3 = w3.shape[1]
    if tile_n is None:
        tile_n = _pick_tile_n(N)
    assert N % tile_n == 0, (N, tile_n)
    num_k = N // tile_n

    w1_map = (lambda b, k: (0, 0, 0)) if Bw == 1 else (lambda b, k: (b, 0, 0))
    kernel = functools.partial(_mlp_max_kernel, last_relu=last_relu)

    out = pl.pallas_call(
        kernel,
        out_shape=jax.ShapeDtypeStruct((B, 1, C3), jnp.float32),
        grid_spec=pltpu.PrefetchScalarGridSpec(
            num_scalar_prefetch=0,
            grid=(B, num_k),
            in_specs=[
                pl.BlockSpec((1, tile_n, Cin), lambda b, k: (b, k, 0)),
                pl.BlockSpec((1, Cin, C1), w1_map),
                pl.BlockSpec((1, C1), lambda b, k: (0, 0)),
                pl.BlockSpec((C1, C2), lambda b, k: (0, 0)),
                pl.BlockSpec((1, C2), lambda b, k: (0, 0)),
                pl.BlockSpec((C2, C3), lambda b, k: (0, 0)),
                pl.BlockSpec((1, C3), lambda b, k: (0, 0)),
            ],
            out_specs=pl.BlockSpec((1, 1, C3), lambda b, k: (b, 0, 0)),
        ),
        compiler_params=pltpu.CompilerParams(
            dimension_semantics=("parallel", "arbitrary"),
            vmem_limit_bytes=32 * 1024 * 1024,
        ),
    )(x, w1, b1, w2, b2, w3, b3)
    # Store inside the kernel is 1024-lane dense; this squeeze is a free XLA reshape.
    return out[:, 0, :]


# ----------------------------------------------------------------------------
# Kernel 2: STN fully-connected head (fc1+bn4+relu, fc2+bn5+relu, fc3, + identity).
# ~0.1% of total FLOPs -> single un-tiled call, explicit whole-array VMEM placement.
# ----------------------------------------------------------------------------
def _fc_head_kernel(x_ref, w1_ref, b1_ref, w2_ref, b2_ref, w3_ref, b3_ref,
                    iden_ref, out_ref):
    h = jnp.dot(x_ref[...], w1_ref[...], preferred_element_type=jnp.float32) + b1_ref[...]
    h = jnp.maximum(h, 0.0)
    h = jnp.dot(h.astype(w2_ref.dtype), w2_ref[...], preferred_element_type=jnp.float32) + b2_ref[...]
    h = jnp.maximum(h, 0.0)
    h = jnp.dot(h.astype(w3_ref.dtype), w3_ref[...], preferred_element_type=jnp.float32) + b3_ref[...]
    out_ref[...] = h + iden_ref[...]


def fc_head(gfeat, fcs, iden):
    """gfeat: (B, 1024) f32 -> (B, k*k) f32 with identity added."""
    (w1, b1), (w2, b2), (w3, b3) = fcs
    B = gfeat.shape[0]
    kk = w3.shape[1]
    vmem = pl.BlockSpec(memory_space=pltpu.MemorySpace.VMEM)
    return pl.pallas_call(
        _fc_head_kernel,
        out_shape=jax.ShapeDtypeStruct((B, kk), jnp.float32),
        in_specs=[vmem] * 8,
        out_specs=vmem,
    )(gfeat.astype(COMPUTE_DTYPE),
      w1.astype(COMPUTE_DTYPE), b1,
      w2.astype(COMPUTE_DTYPE), b2,
      w3.astype(COMPUTE_DTYPE), b3,
      iden)


# ----------------------------------------------------------------------------
# Deterministic parameter construction (conv/linear weights with eval-BN folded in).
# ----------------------------------------------------------------------------
def _folded_layer(key, cin, cout, with_bn=True):
    k1, k2, k3, k4 = jax.random.split(key, 4)
    w = jax.random.normal(k1, (cin, cout), jnp.float32) * 0.1   # (Cin, Cout): transposed conv/linear weight
    b = jax.random.normal(k2, (cout,), jnp.float32) * 0.1
    if with_bn:
        gamma = 1.0 + 0.1 * jax.random.normal(k3, (cout,), jnp.float32)
        beta = 0.1 * jax.random.normal(k4, (cout,), jnp.float32)
        scale = gamma / jnp.sqrt(1.0 + _BN_EPS)    # running_mean=0, running_var=1
        w = w * scale[None, :]
        b = b * scale + beta
    return w, b.reshape(1, cout)


def make_params(channel=3, key=jax.random.PRNGKey(0)):
    ks = jax.random.split(key, 9)
    return {
        "stn_convs": [
            _folded_layer(ks[0], channel, 64),
            _folded_layer(ks[1], 64, 128),
            _folded_layer(ks[2], 128, 1024),
        ],
        "stn_fcs": [
            _folded_layer(ks[3], 1024, 512),
            _folded_layer(ks[4], 512, 256),
            _folded_layer(ks[5], 256, 9, with_bn=False),
        ],
        "enc_convs": [
            _folded_layer(ks[6], channel, 64),
            _folded_layer(ks[7], 64, 128),
            _folded_layer(ks[8], 128, 1024),
        ],
    }


# ----------------------------------------------------------------------------
# Full forward (glue in plain JAX, hot path in Pallas kernels).
# ----------------------------------------------------------------------------
def fold_transform(trans, w1_enc):
    """(x @ T) @ W1 == x @ (T @ W1): per-batch effective first-layer weight (B, 3, C1)."""
    return jnp.einsum("bij,jk->bik", trans, w1_enc).astype(COMPUTE_DTYPE)


def pointnet_encoder_forward(x, params, *, tile_n=None, return_intermediates=False):
    """x: (B, D, N) f32 (PyTorch NCW). Returns (global_feat (B,1024), trans (B,3,3), trans_feat=None)."""
    B, D, N = x.shape
    assert D == 3, "channel=3 configuration; D>3 feature split not exercised"
    xp = jnp.transpose(x, (0, 2, 1)).astype(COMPUTE_DTYPE)              # (B, N, 3) bf16

    def cast_w(convs):
        (w1, b1), (w2, b2), (w3, b3) = convs
        return (w1.astype(COMPUTE_DTYPE), b1, w2.astype(COMPUTE_DTYPE), b2,
                w3.astype(COMPUTE_DTYPE), b3)

    # STN3d: conv stack + max over points, then FC head + identity.
    s1, sb1, s2, sb2, s3, sb3 = cast_w(params["stn_convs"])
    g = pointwise_mlp_max(xp, s1[None], sb1, s2, sb2, s3, sb3,
                          last_relu=True, tile_n=tile_n)                # (B, 1024)
    iden = jnp.eye(3, dtype=jnp.float32).reshape(1, 9)
    trans = fc_head(g, params["stn_fcs"], iden).reshape(B, 3, 3)        # (B, 3, 3)

    # Encoder conv stack with the 3x3 transform folded into layer 1 (no separate bmm pass).
    _, eb1, e2, eb2, e3, eb3 = cast_w(params["enc_convs"])
    w1_eff = fold_transform(trans, params["enc_convs"][0][0])           # (B, 3, 64) bf16
    gfeat = pointwise_mlp_max(xp, w1_eff, eb1, e2, eb2, e3, eb3,
                              last_relu=False, tile_n=tile_n)           # (B, 1024)

    trans_feat = None   # feature_transform=False
    if return_intermediates:
        return gfeat, trans, trans_feat, {"g": g, "w1_eff": w1_eff}
    return gfeat, trans, trans_feat


# ----------------------------------------------------------------------------
# Pure-JAX references.
#  * "mixed" mirrors the kernels' bf16-operand / f32-accumulate numerics (tight check).
#  * "f32" is the torch-op-order full-f32 model (loose sanity check; bf16 is the only delta).
# ----------------------------------------------------------------------------
def _q(a):
    """Quantize to bf16 and back to f32 (mirrors the kernels' operand casts)."""
    return a.astype(COMPUTE_DTYPE).astype(jnp.float32)


def _ref_mlp_max_mixed(xp, w1, b1, w2, b2, w3, b3, last_relu):
    B = xp.shape[0]
    w1 = jnp.broadcast_to(w1, (B,) + w1.shape[1:])
    h = jnp.einsum("bnc,bck->bnk", _q(xp), _q(w1)) + b1
    h = jnp.maximum(h, 0.0)
    h = jnp.einsum("bnc,ck->bnk", _q(h), _q(w2)) + b2
    h = jnp.maximum(h, 0.0)
    h = jnp.einsum("bnc,ck->bnk", _q(h), _q(w3)) + b3
    if last_relu:
        h = jnp.maximum(h, 0.0)
    return jnp.max(h, axis=1)


def _ref_fc_head_mixed(g, fcs, iden):
    (w1, b1), (w2, b2), (w3, b3) = fcs
    h = jnp.maximum(jnp.einsum("bi,ij->bj", _q(g), _q(w1)) + b1, 0.0)
    h = jnp.maximum(jnp.einsum("bi,ij->bj", _q(h), _q(w2)) + b2, 0.0)
    h = jnp.einsum("bi,ij->bj", _q(h), _q(w3)) + b3
    return h + iden


def _mm_hi(a, b):
    return jnp.einsum("...ij,jk->...ik", a, b, precision=jax.lax.Precision.HIGHEST)


def reference_forward_f32(x, params):
    B, D, N = x.shape
    xp = jnp.transpose(x, (0, 2, 1))

    def mlp_max(h, convs, last_relu):
        (w1, b1), (w2, b2), (w3, b3) = convs
        h = jnp.maximum(_mm_hi(h, w1) + b1, 0.0)
        h = jnp.maximum(_mm_hi(h, w2) + b2, 0.0)
        h = _mm_hi(h, w3) + b3
        if last_relu:
            h = jnp.maximum(h, 0.0)
        return jnp.max(h, axis=1)

    g = mlp_max(xp, params["stn_convs"], True)
    (w1, b1), (w2, b2), (w3, b3) = params["stn_fcs"]
    h = jnp.maximum(_mm_hi(g, w1) + b1, 0.0)
    h = jnp.maximum(_mm_hi(h, w2) + b2, 0.0)
    trans = (_mm_hi(h, w3) + b3 + jnp.eye(3, dtype=jnp.float32).reshape(1, 9)).reshape(B, 3, 3)
    xt = jnp.einsum("bnd,bde->bne", xp, trans, precision=jax.lax.Precision.HIGHEST)
    gfeat = mlp_max(xt, params["enc_convs"], False)
    return gfeat, trans


if __name__ == "__main__":
    B, channel, N = 2, 3, 256
    TILE_N = 128   # two point tiles per batch -> exercises the running-max reduction path
    key = jax.random.PRNGKey(0)
    kx, kp = jax.random.split(key)
    x = jax.random.normal(kx, (B, channel, N), jnp.float32)
    params = make_params(channel=channel, key=kp)

    gfeat, trans, trans_feat, inter = pointnet_encoder_forward(
        x, params, tile_n=TILE_N, return_intermediates=True)
    gfeat = jax.block_until_ready(gfeat)
    trans = jax.block_until_ready(trans)

    assert gfeat.shape == (B, 1024) and trans.shape == (B, 3, 3)
    assert trans_feat is None

    # --- per-kernel checks against a pure-JAX mirror of the mixed-precision numerics ---
    xp_f32 = jnp.transpose(x, (0, 2, 1))
    (sw1, sb1), (sw2, sb2), (sw3, sb3) = params["stn_convs"]
    ref_g = _ref_mlp_max_mixed(xp_f32, sw1[None], sb1, sw2, sb2, sw3, sb3, last_relu=True)
    assert jnp.allclose(inter["g"], ref_g, rtol=1e-2, atol=1e-2)

    iden = jnp.eye(3, dtype=jnp.float32).reshape(1, 9)
    ref_trans = _ref_fc_head_mixed(inter["g"], params["stn_fcs"], iden).reshape(B, 3, 3)
    assert jnp.allclose(trans, ref_trans, rtol=1e-2, atol=1e-2)

    (_, eb1), (ew2, eb2), (ew3, eb3) = params["enc_convs"]
    ref_gfeat = _ref_mlp_max_mixed(xp_f32, inter["w1_eff"].astype(jnp.float32), eb1,
                                   ew2, eb2, ew3, eb3, last_relu=False)
    assert jnp.allclose(gfeat, ref_gfeat, rtol=1e-2, atol=1e-2)

    # --- loose sanity check vs the full-f32, torch-op-order model (bf16 quantization only delta) ---
    f32_gfeat, f32_trans = reference_forward_f32(x, params)
    assert jnp.allclose(trans, f32_trans, rtol=1e-1, atol=3e-1)
    assert jnp.allclose(gfeat, f32_gfeat, rtol=1e-1, atol=3e-1)

    print("KERNEL_OK")
</pallas_src>

<mosaic_0001>
module attributes {stable_mosaic.version = 11 : i64} {
  func.func @_mlp_max_kernel(%arg0: i32, %arg1: i32, %arg2: memref<1x128x3xbf16, #tpu.memory_space<vmem>>, %arg3: memref<1x3x64xbf16, #tpu.memory_space<vmem>>, %arg4: memref<1x64xf32, #tpu.memory_space<vmem>>, %arg5: memref<64x128xbf16, #tpu.memory_space<vmem>>, %arg6: memref<1x128xf32, #tpu.memory_space<vmem>>, %arg7: memref<128x1024xbf16, #tpu.memory_space<vmem>>, %arg8: memref<1x1024xf32, #tpu.memory_space<vmem>>, %arg9: memref<1x1x1024xf32, #tpu.memory_space<vmem>>) attributes {dimension_semantics = [#tpu.dimension_semantics<parallel>, #tpu.dimension_semantics<arbitrary>], iteration_bounds = array<i64: 2, 2>, scalar_prefetch = 0 : i64, scratch_operands = 0 : i64, tpu.core_type = #tpu.core_type<tc>, window_params = [{transform_indices = @transform_0, window_bounds = array<i64: 1, 128, 3>}, {pipeline_mode = #tpu.pipeline_mode<synchronous>, transform_indices = @transform_1, window_bounds = array<i64: 1, 3, 64>}, {pipeline_mode = #tpu.pipeline_mode<synchronous>, transform_indices = @transform_2, window_bounds = array<i64: 1, 64>}, {pipeline_mode = #tpu.pipeline_mode<synchronous>, transform_indices = @transform_3, window_bounds = array<i64: 64, 128>}, {pipeline_mode = #tpu.pipeline_mode<synchronous>, transform_indices = @transform_4, window_bounds = array<i64: 1, 128>}, {pipeline_mode = #tpu.pipeline_mode<synchronous>, transform_indices = @transform_5, window_bounds = array<i64: 128, 1024>}, {pipeline_mode = #tpu.pipeline_mode<synchronous>, transform_indices = @transform_6, window_bounds = array<i64: 1, 1024>}, {transform_indices = @transform_7, window_bounds = array<i64: 1, 1, 1024>}]} {
    %c0 = arith.constant 0 : index
    %c0_0 = arith.constant 0 : index
    %c0_1 = arith.constant 0 : index
    %0 = vector.load %arg2[%c0, %c0_0, %c0_1] : memref<1x128x3xbf16, #tpu.memory_space<vmem>>, vector<1x128x3xbf16>
    %1 = vector.shape_cast %0 : vector<1x128x3xbf16> to vector<128x3xbf16>
    %c0_2 = arith.constant 0 : index
    %c0_3 = arith.constant 0 : index
    %c0_4 = arith.constant 0 : index
    %2 = vector.load %arg3[%c0_2, %c0_3, %c0_4] : memref<1x3x64xbf16, #tpu.memory_space<vmem>>, vector<1x3x64xbf16>
    %3 = vector.shape_cast %2 : vector<1x3x64xbf16> to vector<3x64xbf16>
    %cst = arith.constant 0.000000e+00 : f32
    %4 = vector.broadcast %cst : f32 to vector<128x64xf32>
    %5 = vector.extract_strided_slice %1 {offsets = [0, 0], sizes = [128, 1], strides = [1, 1]} : vector<128x3xbf16> to vector<128x1xbf16>
    %6 = arith.extf %5 : vector<128x1xbf16> to vector<128x1xf32>
    %7 = vector.extract_strided_slice %3 {offsets = [0, 0], sizes = [1, 64], strides = [1, 1]} : vector<3x64xbf16> to vector<1x64xbf16>
    %8 = arith.extf %7 : vector<1x64xbf16> to vector<1x64xf32>
    %9 = vector.broadcast %6 : vector<128x1xf32> to vector<128x64xf32>
    %10 = vector.broadcast %8 : vector<1x64xf32> to vector<128x64xf32>
    %11 = arith.mulf %9, %10 : vector<128x64xf32>
    %12 = arith.addf %4, %11 : vector<128x64xf32>
    %13 = vector.extract_strided_slice %1 {offsets = [0, 1], sizes = [128, 1], strides = [1, 1]} : vector<128x3xbf16> to vector<128x1xbf16>
    %14 = arith.extf %13 : vector<128x1xbf16> to vector<128x1xf32>
    %15 = vector.extract_strided_slice %3 {offsets = [1, 0], sizes = [1, 64], strides = [1, 1]} : vector<3x64xbf16> to vector<1x64xbf16>
    %16 = arith.extf %15 : vector<1x64xbf16> to vector<1x64xf32>
    %17 = vector.broadcast %14 : vector<128x1xf32> to vector<128x64xf32>
    %18 = vector.broadcast %16 : vector<1x64xf32> to vector<128x64xf32>
    %19 = arith.mulf %17, %18 : vector<128x64xf32>
    %20 = arith.addf %12, %19 : vector<128x64xf32>
    %21 = vector.extract_strided_slice %1 {offsets = [0, 2], sizes = [128, 1], strides = [1, 1]} : vector<128x3xbf16> to vector<128x1xbf16>
    %22 = arith.extf %21 : vector<128x1xbf16> to vector<128x1xf32>
    %23 = vector.extract_strided_slice %3 {offsets = [2, 0], sizes = [1, 64], strides = [1, 1]} : vector<3x64xbf16> to vector<1x64xbf16>
    %24 = arith.extf %23 : vector<1x64xbf16> to vector<1x64xf32>
    %25 = vector.broadcast %22 : vector<128x1xf32> to vector<128x64xf32>
    %26 = vector.broadcast %24 : vector<1x64xf32> to vector<128x64xf32>
    %27 = arith.mulf %25, %26 : vector<128x64xf32>
    %28 = arith.addf %20, %27 : vector<128x64xf32>
    %c0_5 = arith.constant 0 : index
    %c0_6 = arith.constant 0 : index
    %29 = vector.load %arg4[%c0_5, %c0_6] : memref<1x64xf32, #tpu.memory_space<vmem>>, vector<1x64xf32>
    %30 = vector.broadcast %29 : vector<1x64xf32> to vector<128x64xf32>
    %31 = arith.addf %28, %30 : vector<128x64xf32>
    %cst_7 = arith.constant 0.000000e+00 : f32
    %32 = vector.broadcast %cst_7 : f32 to vector<128x64xf32>
    %33 = arith.maximumf %31, %32 : vector<128x64xf32>
    %34 = arith.truncf %33 : vector<128x64xf32> to vector<128x64xbf16>
    %c0_8 = arith.constant 0 : index
    %c0_9 = arith.constant 0 : index
    %35 = vector.load %arg5[%c0_8, %c0_9] : memref<64x128xbf16, #tpu.memory_space<vmem>>, vector<64x128xbf16>
    %cst_10 = arith.constant dense<0.000000e+00> : vector<128x128xf32>
    %36 = tpu.matmul %34, %35, %cst_10 {dimension_numbers = #tpu.dot_dimension_numbers<[1], [0], [0], [1], [0, 0, 1, 1], [], []>} : vector<128x64xbf16>, vector<64x128xbf16>, vector<128x128xf32> -> vector<128x128xf32>
    %c0_11 = arith.constant 0 : index
    %c0_12 = arith.constant 0 : index
    %37 = vector.load %arg6[%c0_11, %c0_12] : memref<1x128xf32, #tpu.memory_space<vmem>>, vector<1x128xf32>
    %38 = vector.broadcast %37 : vector<1x128xf32> to vector<128x128xf32>
    %39 = arith.addf %36, %38 : vector<128x128xf32>
    %cst_13 = arith.constant 0.000000e+00 : f32
    %40 = vector.broadcast %cst_13 : f32 to vector<128x128xf32>
    %41 = arith.maximumf %39, %40 : vector<128x128xf32>
    %42 = arith.truncf %41 : vector<128x128xf32> to vector<128x128xbf16>
    %c0_14 = arith.constant 0 : index
    %c0_15 = arith.constant 0 : index
    %43 = vector.load %arg7[%c0_14, %c0_15] : memref<128x1024xbf16, #tpu.memory_space<vmem>>, vector<128x1024xbf16>
    %cst_16 = arith.constant dense<0.000000e+00> : vector<128x1024xf32>
    %44 = tpu.matmul %42, %43, %cst_16 {dimension_numbers = #tpu.dot_dimension_numbers<[1], [0], [0], [1], [0, 0, 1, 1], [], []>} : vector<128x128xbf16>, vector<128x1024xbf16>, vector<128x1024xf32> -> vector<128x1024xf32>
    %c0_17 = arith.constant 0 : index
    %c0_18 = arith.constant 0 : index
    %45 = vector.load %arg8[%c0_17, %c0_18] : memref<1x1024xf32, #tpu.memory_space<vmem>>, vector<1x1024xf32>
    %46 = vector.broadcast %45 : vector<1x1024xf32> to vector<128x1024xf32>
    %47 = arith.addf %44, %46 : vector<128x1024xf32>
    %cst_19 = arith.constant 0.000000e+00 : f32
    %48 = vector.broadcast %cst_19 : f32 to vector<128x1024xf32>
    %49 = arith.maximumf %47, %48 : vector<128x1024xf32>
    %cst_20 = arith.constant dense<0xFF800000> : vector<1024xf32>
    %50 = vector.multi_reduction <maximumf>, %49, %cst_20 [0] : vector<128x1024xf32> to vector<1024xf32>
    %51 = vector.shape_cast %50 : vector<1024xf32> to vector<1x1024xf32>
    %c0_i32 = arith.constant 0 : i32
    %52 = arith.cmpi eq, %arg1, %c0_i32 : i32
    %53 = arith.extui %52 : i1 to i32
    %c0_i32_21 = arith.constant 0 : i32
    %54 = arith.cmpi ne, %53, %c0_i32_21 : i32
    scf.if %54 {
      %c0_24 = arith.constant 0 : index
      %c0_25 = arith.constant 0 : index
      %c0_26 = arith.constant 0 : index
      %58 = vector.load %arg9[%c0_24, %c0_25, %c0_26] : memref<1x1x1024xf32, #tpu.memory_space<vmem>>, vector<1x1x1024xf32>
      %59 = vector.shape_cast %58 : vector<1x1x1024xf32> to vector<1x1024xf32>
      %60 = vector.shape_cast %51 : vector<1x1024xf32> to vector<1x1x1024xf32>
      tpu.vector_store %arg9[%c0_24, %c0_25, %c0_26], %60 {strides = array<i32>} : memref<1x1x1024xf32, #tpu.memory_space<vmem>>, vector<1x1x1024xf32>,
    } else {
    }
    %c0_i32_22 = arith.constant 0 : i32
    %55 = arith.cmpi sgt, %arg1, %c0_i32_22 : i32
    %56 = arith.extui %55 : i1 to i32
    %c0_i32_23 = arith.constant 0 : i32
    %57 = arith.cmpi ne, %56, %c0_i32_23 : i32
    scf.if %57 {
      %c0_24 = arith.constant 0 : index
      %c0_25 = arith.constant 0 : index
      %c0_26 = arith.constant 0 : index
      %58 = vector.load %arg9[%c0_24, %c0_25, %c0_26] : memref<1x1x1024xf32, #tpu.memory_space<vmem>>, vector<1x1x1024xf32>
      %59 = vector.shape_cast %58 : vector<1x1x1024xf32> to vector<1x1024xf32>
      %60 = arith.maximumf %59, %51 : vector<1x1024xf32>
      %c0_27 = arith.constant 0 : index
      %c0_28 = arith.constant 0 : index
      %c0_29 = arith.constant 0 : index
      %61 = vector.load %arg9[%c0_27, %c0_28, %c0_29] : memref<1x1x1024xf32, #tpu.memory_space<vmem>>, vector<1x1x1024xf32>
      %62 = vector.shape_cast %61 : vector<1x1x1024xf32> to vector<1x1024xf32>
      %63 = vector.shape_cast %60 : vector<1x1024xf32> to vector<1x1x1024xf32>
      tpu.vector_store %arg9[%c0_27, %c0_28, %c0_29], %63 {strides = array<i32>} : memref<1x1x1024xf32, #tpu.memory_space<vmem>>, vector<1x1x1024xf32>,
    } else {
    }
    return
  }
  func.func @transform_0(%arg0: i32, %arg1: i32) -> (i32, i32, i32) {
    %c0_i32 = arith.constant 0 : i32
    %c0_i32_0 = arith.constant 0 : i32
    return %arg0, %arg1, %c0_i32 : i32, i32, i32
  }
  func.func @transform_1(%arg0: i32, %arg1: i32) -> (i32, i32, i32) {
    %c0_i32 = arith.constant 0 : i32
    %c0_i32_0 = arith.constant 0 : i32
    %c0_i32_1 = arith.constant 0 : i32
    %c0_i32_2 = arith.constant 0 : i32
    return %c0_i32, %c0_i32_0, %c0_i32_1 : i32, i32, i32
  }
  func.func @transform_2(%arg0: i32, %arg1: i32) -> (i32, i32) {
    %c0_i32 = arith.constant 0 : i32
    %c0_i32_0 = arith.constant 0 : i32
    %c0_i32_1 = arith.constant 0 : i32
    return %c0_i32, %c0_i32_0 : i32, i32
  }
  func.func @transform_3(%arg0: i32, %arg1: i32) -> (i32, i32) {
    %c0_i32 = arith.constant 0 : i32
    %c0_i32_0 = arith.constant 0 : i32
    %c0_i32_1 = arith.constant 0 : i32
    return %c0_i32, %c0_i32_0 : i32, i32
  }
  func.func @transform_4(%arg0: i32, %arg1: i32) -> (i32, i32) {
    %c0_i32 = arith.constant 0 : i32
    %c0_i32_0 = arith.constant 0 : i32
    %c0_i32_1 = arith.constant 0 : i32
    return %c0_i32, %c0_i32_0 : i32, i32
  }
  func.func @transform_5(%arg0: i32, %arg1: i32) -> (i32, i32) {
    %c0_i32 = arith.constant 0 : i32
    %c0_i32_0 = arith.constant 0 : i32
    %c0_i32_1 = arith.constant 0 : i32
    return %c0_i32, %c0_i32_0 : i32, i32
  }
  func.func @transform_6(%arg0: i32, %arg1: i32) -> (i32, i32) {
    %c0_i32 = arith.constant 0 : i32
    %c0_i32_0 = arith.constant 0 : i32
    %c0_i32_1 = arith.constant 0 : i32
    return %c0_i32, %c0_i32_0 : i32, i32
  }
  func.func @transform_7(%arg0: i32, %arg1: i32) -> (i32, i32, i32) {
    %c0_i32 = arith.constant 0 : i32
    %c0_i32_0 = arith.constant 0 : i32
    %c0_i32_1 = arith.constant 0 : i32
    return %arg0, %c0_i32, %c0_i32_0 : i32, i32, i32
  }
}

</mosaic_0001>

<llo_original>
// kernel: tpu_custom_call.1
$region0: #{tpu_custom_call.1}
  #allocation0 [shape = 'u32[]', space=smem, size = 0x4, offset = 0x4, fixed_abs, tag = 'smem constant byte address 0x4 - core index']
  #allocation1 [shape = 'u32[72,128]{1,0:T(1,128)}', space=vmem, size = 0x9000, scoped, tag = 'internal scratch']
  %s0 = inlined_call_operand.vmem [shape: bf16[2,256,3], index: 0, kind: input, shape index: {}]
  %s1 = inlined_call_operand.vmem [shape: bf16[1,3,64], index: 1, kind: input, shape index: {}]
  %s2 = inlined_call_operand.vmem [shape: f32[1,64], index: 2, kind: input, shape index: {}]
  %s3 = inlined_call_operand.vmem [shape: bf16[64,128], index: 3, kind: input, shape index: {}]
  %s4 = inlined_call_operand.vmem [shape: f32[1,128], index: 4, kind: input, shape index: {}]
  %s5 = inlined_call_operand.hbm [shape: bf16[128,1024], index: 5, kind: input, shape index: {}]
  %s6 = inlined_call_operand.vmem [shape: f32[1,1024], index: 6, kind: input, shape index: {}]
  %s7 = inlined_call_operand.hbm [shape: f32[2,1,1024], index: 7, kind: output, shape index: {}]
  %s8 = sld [smem:[#allocation0]]
  $region73: #{tpu_custom_call.1} parent=0
    _
  %s10 = ssub.s32 1, %s8
  %s11 = scalar_select 0, %s10, %s8
  $region1: #{tpu_custom_call.1} parent=0
    #allocation2 [shape = 'u8[262144]{0}', space=vmem, size = 0x40000, scoped, tag = 'input window, operand 5, single buffered']
    #allocation3 [shape = 's32[2]{0}', space=sflag, size = 0x8, scoped, tag = 'scoped memory for tpu_custom_call.1']
    #allocation4 [shape = 's32[2]{0}', space=sflag, size = 0x8, scoped, tag = 'scoped memory for tpu_custom_call.1']
    #allocation5 [shape = 'u8[8192]{0}', space=vmem, size = 0x2000, scoped, tag = 'output window, operand 0']
    %12 = vsyncpa [#allocation3], 0
    %13 = vsyncpa [#allocation4], 0
    %s14 = scalar_lea.sflag [#allocation4], 1
    %15 = vsyncpa %s14, 0
    loop: start=0, step=1, limit=6
    $region2: #{tpu_custom_call.1} parent=1 // loop_pre_header
      _
    $region3: #{tpu_custom_call.1} parent=1 // loop_header
      %s17 = sphi 0, %s21
      %p18 = scmp.ge.s32.totalorder %s17, 6
      %s24 = sphi 0, %s36
      %s25 = sphi 0, %s32
      %s26 = sphi 0, %s24
      %s27 = sphi 0, %s25
      %s28 = sphi 0, %s26
      %s29 = sphi 0, %s27
      %s41 = sphi 0, %s43
      %s44 = sphi 0, %s41
      %s45 = sphi 0, %s44
      %s61 = sphi 0, %s45
      %s65 = sphi 0, %s65
      %s67 = sphi 0, %s65
      %s68 = sphi 0, %s67
      %s82 = sphi 0, %s68
      %s86 = sphi 0, %s86
      %s88 = sphi 0, %s86
      %s89 = sphi 0, %s88
      %s103 = sphi 0, %s89
      %s107 = sphi 0, %s107
      %s109 = sphi 0, %s107
      %s110 = sphi 0, %s109
      %s124 = sphi 0, %s110
      %s128 = sphi 0, %s128
      %s130 = sphi 0, %s128
      %s131 = sphi 0, %s130
      %s145 = sphi 0, %s131
      %s149 = sphi 0, %s149
      %s151 = sphi 0, %s149
      %s152 = sphi 0, %s151
      %s166 = sphi 0, %s152
      %s170 = sphi 0, %s170
      %s172 = sphi 0, %s170
      %s173 = sphi 0, %s172
      %s187 = sphi 0, %s173
      %s193 = sphi 0, %s195
      %s196 = sphi 0, %s193
      %s197 = sphi 0, %s196
      %s213 = sphi 0, %s197
    $region4: #{tpu_custom_call.1} parent=1 // loop_header_branch
      %20 = sbr.rel (%p18) target = $region8
    $region5: #{tpu_custom_call.1} parent=1 // loop_body
      %s22 = ssub.s32 %s17, 1
      %s23 = ssub.s32 %s17, 2
      %s30 = sadd.s32 1, %s25
      %p31 = scmp.ge.s32.totalorder %s30, 2
      %s32 = scalar_select %p31, 0, %s30
      %s33 = sadd.s32 1, %s24
      %s34 = scalar_select %p31, %s33, %s24
      %p35 = scmp.ge.s32.totalorder %s34, 2
      %s36 = scalar_select %p35, 0, %s34
      %s37 = ssub.s32 %s24, %s36
      %s38 = ssub.s32 %s25, %s32
      %s39 = sor.u32 %s37, %s38
      %p40 = scmp.eq.s32.totalorder %s39, 0
      %s42 = sadd.s32 %s41, 1
      %s43 = scalar_select %p40, %s41, %s42
      %p46 = pneg %p40
      %p47 = scmp.eq.s32.totalorder %s17, 3
      %p48 = por %p46, %p47
      %p49 = scmp.ne.s32.totalorder %s41, %s44
      %p50 = scmp.eq.s32.totalorder %s17, 0
      %p51 = por %p49, %p50
      %p52 = scmp.ne.s32.totalorder %s41, %s44
      %p53 = scmp.eq.s32.totalorder %s22, 3
      %p54 = por %p52, %p53
      %p55 = scmp.ne.s32.totalorder %s44, %s45
      %p56 = scmp.eq.s32.totalorder %s22, 0
      %p57 = por %p55, %p56
      %p58 = scmp.ne.s32.totalorder %s44, %s45
      %p59 = scmp.eq.s32.totalorder %s23, 3
      %p60 = por %p58, %p59
      %p62 = scmp.ne.s32.totalorder %s45, %s61
      %p63 = scmp.eq.s32.totalorder %s23, 0
      %p64 = por %p62, %p63
      %s66 = sadd.s32 %s65, 1
      %p69 = scmp.eq.s32.totalorder %s17, 3
      %p70 = scmp.ne.s32.totalorder %s65, %s67
      %p71 = scmp.eq.s32.totalorder %s17, 0
      %p72 = por %p70, %p71
      %p73 = scmp.ne.s32.totalorder %s65, %s67
      %p74 = scmp.eq.s32.totalorder %s22, 3
      %p75 = por %p73, %p74
      %p76 = scmp.ne.s32.totalorder %s67, %s68
      %p77 = scmp.eq.s32.totalorder %s22, 0
      %p78 = por %p76, %p77
      %p79 = scmp.ne.s32.totalorder %s67, %s68
      %p80 = scmp.eq.s32.totalorder %s23, 3
      %p81 = por %p79, %p80
      %p83 = scmp.ne.s32.totalorder %s68, %s82
      %p84 = scmp.eq.s32.totalorder %s23, 0
      %p85 = por %p83, %p84
      %s87 = sadd.s32 %s86, 1
      %p90 = scmp.eq.s32.totalorder %s17, 3
      %p91 = scmp.ne.s32.totalorder %s86, %s88
      %p92 = scmp.eq.s32.totalorder %s17, 0
      %p93 = por %p91, %p92
      %p94 = scmp.ne.s32.totalorder %s86, %s88
      %p95 = scmp.eq.s32.totalorder %s22, 3
      %p96 = por %p94, %p95
      %p97 = scmp.ne.s32.totalorder %s88, %s89
      %p98 = scmp.eq.s32.totalorder %s22, 0
      %p99 = por %p97, %p98
      %p100 = scmp.ne.s32.totalorder %s88, %s89
      %p101 = scmp.eq.s32.totalorder %s23, 3
      %p102 = por %p100, %p101
      %p104 = scmp.ne.s32.totalorder %s89, %s103
      %p105 = scmp.eq.s32.totalorder %s23, 0
      %p106 = por %p104, %p105
      %s108 = sadd.s32 %s107, 1
      %p111 = scmp.eq.s32.totalorder %s17, 3
      %p112 = scmp.ne.s32.totalorder %s107, %s109
      %p113 = scmp.eq.s32.totalorder %s17, 0
      %p114 = por %p112, %p113
      %p115 = scmp.ne.s32.totalorder %s107, %s109
      %p116 = scmp.eq.s32.totalorder %s22, 3
      %p117 = por %p115, %p116
      %p118 = scmp.ne.s32.totalorder %s109, %s110
      %p119 = scmp.eq.s32.totalorder %s22, 0
      %p120 = por %p118, %p119
      %p121 = scmp.ne.s32.totalorder %s109, %s110
      %p122 = scmp.eq.s32.totalorder %s23, 3
      %p123 = por %p121, %p122
      %p125 = scmp.ne.s32.totalorder %s110, %s124
      %p126 = scmp.eq.s32.totalorder %s23, 0
      %p127 = por %p125, %p126
      %s129 = sadd.s32 %s128, 1
      %p132 = scmp.eq.s32.totalorder %s17, 3
      %p133 = scmp.ne.s32.totalorder %s128, %s130
      %p134 = scmp.eq.s32.totalorder %s17, 0
      %p135 = por %p133, %p134
      %p136 = scmp.ne.s32.totalorder %s128, %s130
      %p137 = scmp.eq.s32.totalorder %s22, 3
      %p138 = por %p136, %p137
      %p139 = scmp.ne.s32.totalorder %s130, %s131
      %p140 = scmp.eq.s32.totalorder %s22, 0
      %p141 = por %p139, %p140
      %p142 = scmp.ne.s32.totalorder %s130, %s131
      %p143 = scmp.eq.s32.totalorder %s23, 3
      %p144 = por %p142, %p143
      %p146 = scmp.ne.s32.totalorder %s131, %s145
      %p147 = scmp.eq.s32.totalorder %s23, 0
      %p148 = por %p146, %p147
      %s150 = sadd.s32 %s149, 1
      %p153 = scmp.eq.s32.totalorder %s17, 3
      %p154 = scmp.ne.s32.totalorder %s149, %s151
      %p155 = scmp.eq.s32.totalorder %s17, 0
      %p156 = por %p154, %p155
      %p157 = scmp.ne.s32.totalorder %s149, %s151
      %p158 = scmp.eq.s32.totalorder %s22, 3
      %p159 = por %p157, %p158
      %p160 = scmp.ne.s32.totalorder %s151, %s152
      %p161 = scmp.eq.s32.totalorder %s22, 0
      %p162 = por %p160, %p161
      %p163 = scmp.ne.s32.totalorder %s151, %s152
      %p164 = scmp.eq.s32.totalorder %s23, 3
      %p165 = por %p163, %p164
      %p167 = scmp.ne.s32.totalorder %s152, %s166
      %p168 = scmp.eq.s32.totalorder %s23, 0
      %p169 = por %p167, %p168
      %s171 = sadd.s32 %s170, 1
      %p174 = scmp.eq.s32.totalorder %s17, 3
      %p175 = scmp.ne.s32.totalorder %s170, %s172
      %p176 = scmp.eq.s32.totalorder %s17, 0
      %p177 = por %p175, %p176
      %p178 = scmp.ne.s32.totalorder %s170, %s172
      %p179 = scmp.eq.s32.totalorder %s22, 3
      %p180 = por %p178, %p179
      %p181 = scmp.ne.s32.totalorder %s172, %s173
      %p182 = scmp.eq.s32.totalorder %s22, 0
      %p183 = por %p181, %p182
      %p184 = scmp.ne.s32.totalorder %s172, %s173
      %p185 = scmp.eq.s32.totalorder %s23, 3
      %p186 = por %p184, %p185
      %p188 = scmp.ne.s32.totalorder %s173, %s187
      %p189 = scmp.eq.s32.totalorder %s23, 0
      %p190 = por %p188, %p189
      %s191 = ssub.s32 %s24, %s36
      %p192 = scmp.eq.s32.totalorder %s191, 0
      %s194 = sadd.s32 %s193, 1
      %s195 = scalar_select %p192, %s193, %s194
      %p198 = pneg %p192
      %p199 = scmp.eq.s32.totalorder %s17, 3
      %p200 = por %p198, %p199
      %p201 = scmp.ne.s32.totalorder %s193, %s196
      %p202 = scmp.eq.s32.totalorder %s17, 0
      %p203 = por %p201, %p202
      %p204 = scmp.ne.s32.totalorder %s193, %s196
      %p205 = scmp.eq.s32.totalorder %s22, 3
      %p206 = por %p204, %p205
      %p207 = scmp.ne.s32.totalorder %s196, %s197
      %p208 = scmp.eq.s32.totalorder %s22, 0
      %p209 = por %p207, %p208
      %p210 = scmp.ne.s32.totalorder %s196, %s197
      %p211 = scmp.eq.s32.totalorder %s23, 3
      %p212 = por %p210, %p211
      %p214 = scmp.ne.s32.totalorder %s197, %s213
      %p215 = scmp.eq.s32.totalorder %s23, 0
      %p216 = por %p214, %p215
      %p217 = scmp.le.s32.totalorder 1, %s17
      %p218 = scmp.lt.s32.totalorder %s17, 5
      %p219 = pnand %p217, %p218
      %p220 = pneg %p219
      // Predicated region
      $region9: #{tpu_custom_call.1} parent=5 // pred_check
        _
      $region10: #{tpu_custom_call.1} parent=5 // pred_check_branch
        %222 = sbr.rel (%p219) target = $region12
      $region11: #{tpu_custom_call.1} parent=5 // pred_region
        %s223 = ssub.s32 %s17, 1
        // Predicated region
        $region13: #{tpu_custom_call.1} parent=11 // pred_check
          %p224 = pneg %p78
        $region14: #{tpu_custom_call.1} parent=11 // pred_check_branch
          %226 = sbr.rel (%p224) target = $region16
        $region15: #{tpu_custom_call.1} parent=11 // pred_region
          _
        $region16: #{tpu_custom_call.1} parent=11 // pred_fallthru
          _
        // Predicated region
        $region17: #{tpu_custom_call.1} parent=11 // pred_check
          %p227 = pneg %p99
        $region18: #{tpu_custom_call.1} parent=11 // pred_check_branch
          %229 = sbr.rel (%p227) target = $region20
        $region19: #{tpu_custom_call.1} parent=11 // pred_region
          _
        $region20: #{tpu_custom_call.1} parent=11 // pred_fallthru
          _
        // Predicated region
        $region21: #{tpu_custom_call.1} parent=11 // pred_check
          %p230 = pneg %p120
        $region22: #{tpu_custom_call.1} parent=11 // pred_check_branch
          %232 = sbr.rel (%p230) target = $region24
        $region23: #{tpu_custom_call.1} parent=11 // pred_region
          _
        $region24: #{tpu_custom_call.1} parent=11 // pred_fallthru
          _
        // Predicated region
        $region25: #{tpu_custom_call.1} parent=11 // pred_check
          %p233 = pneg %p141
        $region26: #{tpu_custom_call.1} parent=11 // pred_check_branch
          %235 = sbr.rel (%p233) target = $region28
        $region27: #{tpu_custom_call.1} parent=11 // pred_region
          _
        $region28: #{tpu_custom_call.1} parent=11 // pred_fallthru
          _
        // Predicated region
        $region29: #{tpu_custom_call.1} parent=11 // pred_check
          %p236 = pneg %p162
        $region30: #{tpu_custom_call.1} parent=11 // pred_check_branch
          %238 = sbr.rel (%p236) target = $region32
        $region31: #{tpu_custom_call.1} parent=11 // pred_region
          %240 = vsyncadd [#allocation3], 0
          %s241 = sshll.u32 %s5, 4
          %s242 = int_to_ptr.hbm [resolvable:$true] %s241
          %s243 = sshll.u32 [#allocation2], 4
          %s244 = int_to_ptr.vmem [resolvable:$true] %s243
          %249 = dma.hbm_to_vmem [thread:$0]  %s242, 8192, %s244, [#allocation3], 512, 512, 32
        $region32: #{tpu_custom_call.1} parent=11 // pred_fallthru
          _
        // Predicated region
        $region33: #{tpu_custom_call.1} parent=11 // pred_check
          %p250 = pneg %p183
        $region34: #{tpu_custom_call.1} parent=11 // pred_check_branch
          %252 = sbr.rel (%p250) target = $region36
        $region35: #{tpu_custom_call.1} parent=11 // pred_region
          _
        $region36: #{tpu_custom_call.1} parent=11 // pred_fallthru
          _
      $region12: #{tpu_custom_call.1} parent=5 // pred_fallthru
        _
      %p253 = scmp.lt.s32.totalorder %s17, 4
      // Predicated region
      $region37: #{tpu_custom_call.1} parent=5 // pred_check
        %p254 = pneg %p253
      $region38: #{tpu_custom_call.1} parent=5 // pred_check_branch
        %256 = sbr.rel (%p254) target = $region40
      $region39: #{tpu_custom_call.1} parent=5 // pred_region
        // Predicated region
        $region41: #{tpu_custom_call.1} parent=39 // pred_check
          %p257 = pneg %p51
        $region42: #{tpu_custom_call.1} parent=39 // pred_check_branch
          %259 = sbr.rel (%p257) target = $region44
        $region43: #{tpu_custom_call.1} parent=39 // pred_region
          %s260 = smul.u32 16, %s25
          %p261 = scmp.lt.s32.totalorder %s24, 1
          %s262 = scalar_select %p261, %s24, 1
          %p263 = scmp.lt.s32.totalorder %s260, 31
          %s264 = scalar_select %p263, %s260, 31
          %s265 = smul.addr %s262, 32
          %s266 = sadd.s32 %s264, %s265
          %s267 = smul.addr %s266, 4
          %s268 = scalar_lea.vmem %s0, %s267
          %s269 = smul.u32 16, %s25
        $region44: #{tpu_custom_call.1} parent=39 // pred_fallthru
          _
      $region40: #{tpu_custom_call.1} parent=5 // pred_fallthru
        _
      %p270 = scmp.le.s32.totalorder 1, %s17
      %p271 = scmp.lt.s32.totalorder %s17, 5
      %p272 = pnand %p270, %p271
      %p273 = pneg %p272
      // Predicated region
      $region45: #{tpu_custom_call.1} parent=5 // pred_check
        _
      $region46: #{tpu_custom_call.1} parent=5 // pred_check_branch
        %275 = sbr.rel (%p272) target = $region48
      $region47: #{tpu_custom_call.1} parent=5 // pred_region
        %s276 = ssub.s32 %s17, 1
        // Predicated region
        $region49: #{tpu_custom_call.1} parent=47 // pred_check
          %p277 = pneg %p162
        $region50: #{tpu_custom_call.1} parent=47 // pred_check_branch
          %279 = sbr.rel (%p277) target = $region52
        $region51: #{tpu_custom_call.1} parent=47 // pred_region
          %281 = dma.done [#allocation3], 8192
        $region52: #{tpu_custom_call.1} parent=47 // pred_fallthru
          _
        %s282 = smul.u32 16, %s27
        %p283 = scmp.lt.s32.totalorder %s26, 1
        %s284 = scalar_select %p283, %s26, 1
        %p285 = scmp.lt.s32.totalorder %s282, 31
        %s286 = scalar_select %p285, %s282, 31
        %s287 = smul.addr %s284, 32
        %s288 = sadd.s32 %s286, %s287
        %s289 = smul.addr %s288, 4
        %s290 = scalar_lea.vmem %s0, %s289
        %p291 = pneg %p57
        %p292 = pneg %p54
        %p293 = pneg %p78
        %p294 = pneg %p75
        %p295 = pneg %p99
        %p296 = pneg %p96
        %p297 = pneg %p120
        %p298 = pneg %p117
        %p299 = pneg %p141
        %p300 = pneg %p138
        %p301 = pneg %p162
        %p302 = pneg %p159
        %p303 = pneg %p183
        %p304 = pneg %p180
        %p305 = pneg %p209
        %p306 = pneg %p206
        %s307 = sand.u32 %s196, 1
        %s308 = scalar_lea.sflag [#allocation4], %s307
        %s309 = sand.u32 %s196, 1
        %s310 = smul.addr %s309, 8
        %s311 = scalar_lea.vmem [#allocation5], %s310
        %s312 = smul.u32 16, %s27
        %p313 = scmp.lt.s32.totalorder %s26, 1
        %s314 = scalar_select %p313, %s26, 1
        %p315 = scmp.lt.s32.totalorder %s312, 31
        %s316 = scalar_select %p315, %s312, 31
        %s317 = smul.addr %s314, 32
        %s318 = sadd.s32 %s316, %s317
        %s319 = smul.addr %s318, 4
        %s320 = scalar_lea.vmem %s0, %s319
        %s321 = smul.u32 16, %s27
        %v323 = vld [vmem:[%s320] sm:$0xf]
        %v324 = vld [vmem:[%s320 + $0x4] sm:$0xf]
        %v325 = vld [vmem:[%s320 + $0x8] sm:$0xf]
        %v326 = vld [vmem:[%s320 + $0xc] sm:$0xf]
        %v327 = vld [vmem:[%s320 + $0x10] sm:$0xf]
        %v328 = vld [vmem:[%s320 + $0x14] sm:$0xf]
        %v329 = vld [vmem:[%s320 + $0x18] sm:$0xf]
        %v330 = vld [vmem:[%s320 + $0x1c] sm:$0xf]
        %v331 = vld [vmem:[%s320 + $0x20] sm:$0xf]
        %v332 = vld [vmem:[%s320 + $0x24] sm:$0xf]
        %v333 = vld [vmem:[%s320 + $0x28] sm:$0xf]
        %v334 = vld [vmem:[%s320 + $0x2c] sm:$0xf]
        %v335 = vld [vmem:[%s320 + $0x30] sm:$0xf]
        %v336 = vld [vmem:[%s320 + $0x34] sm:$0xf]
        %v337 = vld [vmem:[%s320 + $0x38] sm:$0xf]
        %v338 = vld [vmem:[%s320 + $0x3c] sm:$0xf]
        %v339 = vld [vmem:[%s1] sm:$0x3]
        %v340 = vunpack.c.l.bf16 %v323
        %v341 = vunpack.c.l.bf16 %v324
        %v342 = vunpack.c.l.bf16 %v325
        %v343 = vunpack.c.l.bf16 %v326
        %v344 = vunpack.c.l.bf16 %v327
        %v345 = vunpack.c.l.bf16 %v328
        %v346 = vunpack.c.l.bf16 %v329
        %v347 = vunpack.c.l.bf16 %v330
        %v348 = vunpack.c.l.bf16 %v331
        %v349 = vunpack.c.l.bf16 %v332
        %v350 = vunpack.c.l.bf16 %v333
        %v351 = vunpack.c.l.bf16 %v334
        %v352 = vunpack.c.l.bf16 %v335
        %v353 = vunpack.c.l.bf16 %v336
        %v354 = vunpack.c.l.bf16 %v337
        %v355 = vunpack.c.l.bf16 %v338
        %v356 = vunpack.c.l.bf16 %v339
        %358 = vset.pattern.permute.xlu0 0
        %359 = vperm.xlu0 %358, %v340
        %v360 = vpop.permute.xlu0 %359
        %363 = vset.pattern.permute.xlu0 0
        %364 = vperm.xlu0 %363, %v341
        %v365 = vpop.permute.xlu0 %364
        %368 = vset.pattern.permute.xlu0 0
        %369 = vperm.xlu0 %368, %v342
        %v370 = vpop.permute.xlu0 %369
        %373 = vset.pattern.permute.xlu0 0
        %374 = vperm.xlu0 %373, %v343
        %v375 = vpop.permute.xlu0 %374
        %378 = vset.pattern.permute.xlu0 0
        %379 = vperm.xlu0 %378, %v344
        %v380 = vpop.permute.xlu0 %379
        %383 = vset.pattern.permute.xlu0 0
        %384 = vperm.xlu0 %383, %v345
        %v385 = vpop.permute.xlu0 %384
        %388 = vset.pattern.permute.xlu0 0
        %389 = vperm.xlu0 %388, %v346
        %v390 = vpop.permute.xlu0 %389
        %393 = vset.pattern.permute.xlu0 0
        %394 = vperm.xlu0 %393, %v347
        %v395 = vpop.permute.xlu0 %394
        %398 = vset.pattern.permute.xlu0 0
        %399 = vperm.xlu0 %398, %v348
        %v400 = vpop.permute.xlu0 %399
        %403 = vset.pattern.permute.xlu0 0
        %404 = vperm.xlu0 %403, %v349
        %v405 = vpop.permute.xlu0 %404
        %408 = vset.pattern.permute.xlu0 0
        %409 = vperm.xlu0 %408, %v350
        %v410 = vpop.permute.xlu0 %409
        %413 = vset.pattern.permute.xlu0 0
        %414 = vperm.xlu0 %413, %v351
        %v415 = vpop.permute.xlu0 %414
        %418 = vset.pattern.permute.xlu0 0
        %419 = vperm.xlu0 %418, %v352
        %v420 = vpop.permute.xlu0 %419
        %423 = vset.pattern.permute.xlu0 0
        %424 = vperm.xlu0 %423, %v353
        %v425 = vpop.permute.xlu0 %424
        %428 = vset.pattern.permute.xlu0 0
        %429 = vperm.xlu0 %428, %v354
        %v430 = vpop.permute.xlu0 %429
        %433 = vset.pattern.permute.xlu0 0
        %434 = vperm.xlu0 %433, %v355
        %v435 = vpop.permute.xlu0 %434
        %v437 = vperm.slane %v356, 0
        %v438 = vmul.f32 %v360, %v437
        %v439 = vmul.f32 %v365, %v437
        %v440 = vmul.f32 %v370, %v437
        %v441 = vmul.f32 %v375, %v437
        %v442 = vmul.f32 %v380, %v437
        %v443 = vmul.f32 %v385, %v437
        %v444 = vmul.f32 %v390, %v437
        %v445 = vmul.f32 %v395, %v437
        %v446 = vmul.f32 %v400, %v437
        %v447 = vmul.f32 %v405, %v437
        %v448 = vmul.f32 %v410, %v437
        %v449 = vmul.f32 %v415, %v437
        %v450 = vmul.f32 %v420, %v437
        %v451 = vmul.f32 %v425, %v437
        %v452 = vmul.f32 %v430, %v437
        %v453 = vmul.f32 %v435, %v437
        %v454 = vadd.f32 %v438, 0.0
        %v455 = vadd.f32 %v439, 0.0
        %v456 = vadd.f32 %v440, 0.0
        %v457 = vadd.f32 %v441, 0.0
        %v458 = vadd.f32 %v442, 0.0
        %v459 = vadd.f32 %v443, 0.0
        %v460 = vadd.f32 %v444, 0.0
        %v461 = vadd.f32 %v445, 0.0
        %v462 = vadd.f32 %v446, 0.0
        %v463 = vadd.f32 %v447, 0.0
        %v464 = vadd.f32 %v448, 0.0
        %v465 = vadd.f32 %v449, 0.0
        %v466 = vadd.f32 %v450, 0.0
        %v467 = vadd.f32 %v451, 0.0
        %v468 = vadd.f32 %v452, 0.0
        %v469 = vadd.f32 %v453, 0.0
        %470 = vset.pattern.permute.xlu0 1
        %471 = vperm.xlu0 %470, %v340
        %v472 = vpop.permute.xlu0 %471
        %474 = vset.pattern.permute.xlu0 1
        %475 = vperm.xlu0 %474, %v341
        %v476 = vpop.permute.xlu0 %475
        %478 = vset.pattern.permute.xlu0 1
        %479 = vperm.xlu0 %478, %v342
        %v480 = vpop.permute.xlu0 %479
        %482 = vset.pattern.permute.xlu0 1
        %483 = vperm.xlu0 %482, %v343
        %v484 = vpop.permute.xlu0 %483
        %486 = vset.pattern.permute.xlu0 1
        %487 = vperm.xlu0 %486, %v344
        %v488 = vpop.permute.xlu0 %487
        %490 = vset.pattern.permute.xlu0 1
        %491 = vperm.xlu0 %490, %v345
        %v492 = vpop.permute.xlu0 %491
        %494 = vset.pattern.permute.xlu0 1
        %495 = vperm.xlu0 %494, %v346
        %v496 = vpop.permute.xlu0 %495
        %498 = vset.pattern.permute.xlu0 1
        %499 = vperm.xlu0 %498, %v347
        %v500 = vpop.permute.xlu0 %499
        %502 = vset.pattern.permute.xlu0 1
        %503 = vperm.xlu0 %502, %v348
        %v504 = vpop.permute.xlu0 %503
        %506 = vset.pattern.permute.xlu0 1
        %507 = vperm.xlu0 %506, %v349
        %v508 = vpop.permute.xlu0 %507
        %510 = vset.pattern.permute.xlu0 1
        %511 = vperm.xlu0 %510, %v350
        %v512 = vpop.permute.xlu0 %511
        %514 = vset.pattern.permute.xlu0 1
        %515 = vperm.xlu0 %514, %v351
        %v516 = vpop.permute.xlu0 %515
        %518 = vset.pattern.permute.xlu0 1
        %519 = vperm.xlu0 %518, %v352
        %v520 = vpop.permute.xlu0 %519
        %522 = vset.pattern.permute.xlu0 1
        %523 = vperm.xlu0 %522, %v353
        %v524 = vpop.permute.xlu0 %523
        %526 = vset.pattern.permute.xlu0 1
        %527 = vperm.xlu0 %526, %v354
        %v528 = vpop.permute.xlu0 %527
        %530 = vset.pattern.permute.xlu0 1
        %531 = vperm.xlu0 %530, %v355
        %v532 = vpop.permute.xlu0 %531
        %v534 = vperm.slane %v356, 1
        %v535 = vmul.f32 %v472, %v534
        %v536 = vmul.f32 %v476, %v534
        %v537 = vmul.f32 %v480, %v534
        %v538 = vmul.f32 %v484, %v534
        %v539 = vmul.f32 %v488, %v534
        %v540 = vmul.f32 %v492, %v534
        %v541 = vmul.f32 %v496, %v534
        %v542 = vmul.f32 %v500, %v534
        %v543 = vmul.f32 %v504, %v534
        %v544 = vmul.f32 %v508, %v534
        %v545 = vmul.f32 %v512, %v534
        %v546 = vmul.f32 %v516, %v534
        %v547 = vmul.f32 %v520, %v534
        %v548 = vmul.f32 %v524, %v534
        %v549 = vmul.f32 %v528, %v534
        %v550 = vmul.f32 %v532, %v534
        %v551 = vadd.f32 %v454, %v535
        %v552 = vadd.f32 %v455, %v536
        %v553 = vadd.f32 %v456, %v537
        %v554 = vadd.f32 %v457, %v538
        %v555 = vadd.f32 %v458, %v539
        %v556 = vadd.f32 %v459, %v540
        %v557 = vadd.f32 %v460, %v541
        %v558 = vadd.f32 %v461, %v542
        %v559 = vadd.f32 %v462, %v543
        %v560 = vadd.f32 %v463, %v544
        %v561 = vadd.f32 %v464, %v545
        %v562 = vadd.f32 %v465, %v546
        %v563 = vadd.f32 %v466, %v547
        %v564 = vadd.f32 %v467, %v548
        %v565 = vadd.f32 %v468, %v549
        %v566 = vadd.f32 %v469, %v550
        %567 = vset.pattern.permute.xlu0 2
        %568 = vperm.xlu0 %567, %v340
        %v569 = vpop.permute.xlu0 %568
        %571 = vset.pattern.permute.xlu0 2
        %572 = vperm.xlu0 %571, %v341
        %v573 = vpop.permute.xlu0 %572
        %575 = vset.pattern.permute.xlu0 2
        %576 = vperm.xlu0 %575, %v342
        %v577 = vpop.permute.xlu0 %576
        %579 = vset.pattern.permute.xlu0 2
        %580 = vperm.xlu0 %579, %v343
        %v581 = vpop.permute.xlu0 %580
        %583 = vset.pattern.permute.xlu0 2
        %584 = vperm.xlu0 %583, %v344
        %v585 = vpop.permute.xlu0 %584
        %587 = vset.pattern.permute.xlu0 2
        %588 = vperm.xlu0 %587, %v345
        %v589 = vpop.permute.xlu0 %588
        %591 = vset.pattern.permute.xlu0 2
        %592 = vperm.xlu0 %591, %v346
        %v593 = vpop.permute.xlu0 %592
        %595 = vset.pattern.permute.xlu0 2
        %596 = vperm.xlu0 %595, %v347
        %v597 = vpop.permute.xlu0 %596
        %599 = vset.pattern.permute.xlu0 2
        %600 = vperm.xlu0 %599, %v348
        %v601 = vpop.permute.xlu0 %600
        %603 = vset.pattern.permute.xlu0 2
        %604 = vperm.xlu0 %603, %v349
        %v605 = vpop.permute.xlu0 %604
        %607 = vset.pattern.permute.xlu0 2
        %608 = vperm.xlu0 %607, %v350
        %v609 = vpop.permute.xlu0 %608
        %611 = vset.pattern.permute.xlu0 2
        %612 = vperm.xlu0 %611, %v351
        %v613 = vpop.permute.xlu0 %612
        %615 = vset.pattern.permute.xlu0 2
        %616 = vperm.xlu0 %615, %v352
        %v617 = vpop.permute.xlu0 %616
        %619 = vset.pattern.permute.xlu0 2
        %620 = vperm.xlu0 %619, %v353
        %v621 = vpop.permute.xlu0 %620
        %623 = vset.pattern.permute.xlu0 2
        %624 = vperm.xlu0 %623, %v354
        %v625 = vpop.permute.xlu0 %624
        %627 = vset.pattern.permute.xlu0 2
        %628 = vperm.xlu0 %627, %v355
        %v629 = vpop.permute.xlu0 %628
        %v631 = vperm.slane %v356, 2
        %v632 = vmul.f32 %v569, %v631
        %v633 = vmul.f32 %v573, %v631
        %v634 = vmul.f32 %v577, %v631
        %v635 = vmul.f32 %v581, %v631
        %v636 = vmul.f32 %v585, %v631
        %v637 = vmul.f32 %v589, %v631
        %v638 = vmul.f32 %v593, %v631
        %v639 = vmul.f32 %v597, %v631
        %v640 = vmul.f32 %v601, %v631
        %v641 = vmul.f32 %v605, %v631
        %v642 = vmul.f32 %v609, %v631
        %v643 = vmul.f32 %v613, %v631
        %v644 = vmul.f32 %v617, %v631
        %v645 = vmul.f32 %v621, %v631
        %v646 = vmul.f32 %v625, %v631
        %v647 = vmul.f32 %v629, %v631
        %v648 = vadd.f32 %v551, %v632
        %v649 = vadd.f32 %v552, %v633
        %v650 = vadd.f32 %v553, %v634
        %v651 = vadd.f32 %v554, %v635
        %v652 = vadd.f32 %v555, %v636
        %v653 = vadd.f32 %v556, %v637
        %v654 = vadd.f32 %v557, %v638
        %v655 = vadd.f32 %v558, %v639
        %v656 = vadd.f32 %v559, %v640
        %v657 = vadd.f32 %v560, %v641
        %v658 = vadd.f32 %v561, %v642
        %v659 = vadd.f32 %v562, %v643
        %v660 = vadd.f32 %v563, %v644
        %v661 = vadd.f32 %v564, %v645
        %v662 = vadd.f32 %v565, %v646
        %v663 = vadd.f32 %v566, %v647
        %v664 = vld [vmem:[%s2] sm:$0x1]
        %v666 = vperm.slane %v664, 0
        %v668 = vadd.f32 %v648, %v666
        %v669 = vadd.f32 %v649, %v666
        %v670 = vadd.f32 %v650, %v666
        %v671 = vadd.f32 %v651, %v666
        %v672 = vadd.f32 %v652, %v666
        %v673 = vadd.f32 %v653, %v666
        %v674 = vadd.f32 %v654, %v666
        %v675 = vadd.f32 %v655, %v666
        %v676 = vadd.f32 %v656, %v666
        %v677 = vadd.f32 %v657, %v666
        %v678 = vadd.f32 %v658, %v666
        %v679 = vadd.f32 %v659, %v666
        %v680 = vadd.f32 %v660, %v666
        %v681 = vadd.f32 %v661, %v666
        %v682 = vadd.f32 %v662, %v666
        %v683 = vadd.f32 %v663, %v666
        %v684 = vmax.f32 %v668, 0.0
        %v685 = vmax.f32 %v669, 0.0
        %v686 = vmax.f32 %v670, 0.0
        %v687 = vmax.f32 %v671, 0.0
        %v688 = vmax.f32 %v672, 0.0
        %v689 = vmax.f32 %v673, 0.0
        %v690 = vmax.f32 %v674, 0.0
        %v691 = vmax.f32 %v675, 0.0
        %v692 = vmax.f32 %v676, 0.0
        %v693 = vmax.f32 %v677, 0.0
        %v694 = vmax.f32 %v678, 0.0
        %v695 = vmax.f32 %v679, 0.0
        %v696 = vmax.f32 %v680, 0.0
        %v697 = vmax.f32 %v681, 0.0
        %v698 = vmax.f32 %v682, 0.0
        %v699 = vmax.f32 %v683, 0.0
        %v700 = vpack.c.bf16 %v685, %v684
        %v701 = vpack.c.bf16 %v687, %v686
        %v702 = vpack.c.bf16 %v689, %v688
        %v703 = vpack.c.bf16 %v691, %v690
        %v704 = vpack.c.bf16 %v693, %v692
        %v705 = vpack.c.bf16 %v695, %v694
        %v706 = vpack.c.bf16 %v697, %v696
        %v707 = vpack.c.bf16 %v699, %v698
        %v708 = vld [vmem:[%s3] sm:$0xf]
        %v709 = vld [vmem:[%s3 + $0x4] sm:$0xf]
        %v710 = vld [vmem:[%s3 + $0x8] sm:$0xf]
        %v711 = vld [vmem:[%s3 + $0xc] sm:$0xf]
        %v712 = vld [vmem:[%s3 + $0x10] sm:$0xf]
        %v713 = vld [vmem:[%s3 + $0x14] sm:$0xf]
        %v714 = vld [vmem:[%s3 + $0x18] sm:$0xf]
        %v715 = vld [vmem:[%s3 + $0x1c] sm:$0xf]
        %v716 = vld [vmem:[%s4] sm:$0x1]
        %v718 = vperm.slane %v716, 0
        %v728 = vunpack.c.l.b16 %v708
        %v729 = vunpack.c.l.b16 %v709
        %v730 = vunpack.c.l.b16 %v710
        %v731 = vunpack.c.l.b16 %v711
        %v732 = vunpack.c.l.b16 %v712
        %v733 = vunpack.c.l.b16 %v713
        %v734 = vunpack.c.l.b16 %v714
        %v735 = vunpack.c.l.b16 %v715
        %v736 = vpack.c.b16 %v729, %v728
        %v737 = vpack.c.b16 %v731, %v730
        %v738 = vpack.c.b16 %v733, %v732
        %v739 = vpack.c.b16 %v735, %v734
        %vm744 = vcmask 523264
        %v746 = vsel %vm744, %v700, 0
        %v749 = vsel %vm744, %v701, 0
        %v752 = vsel %vm744, %v702, 0
        %v755 = vsel %vm744, %v703, 0
        %v758 = vsel %vm744, %v704, 0
        %v761 = vsel %vm744, %v705, 0
        %v764 = vsel %vm744, %v706, 0
        %v767 = vsel %vm744, %v707, 0
        %769 = vmatpush.bf16.msra.mxu0 0
        %770 = vmatpush.bf16.msra.mxu0 0
        %771 = vmatpush.bf16.msra.mxu0 0
        %772 = vmatpush.bf16.msra.mxu0 0
        %773 = vmatpush.bf16.msra.mxu0 %v739
        %774 = vmatpush.bf16.msra.mxu0 %v738
        %775 = vmatpush.bf16.msra.mxu0 %v737
        %776 = vmatpush.bf16.msra.mxu0 %v736
        %777 = vmatmul.bf16.gmra.mxu0 %v746
        %v778 = vpop.f32.mrf.mxu0
        %v779 = vadd.f32 %v718, %v778
        %v780 = vpop.f32.mrf.mxu0
        %v781 = vadd.f32 %v718, %v780
        %782 = vmatmul.bf16.gmra.mxu0 %v749
        %v783 = vpop.f32.mrf.mxu0
        %v784 = vadd.f32 %v718, %v783
        %v785 = vpop.f32.mrf.mxu0
        %v786 = vadd.f32 %v718, %v785
        %787 = vmatmul.bf16.gmra.mxu0 %v752
        %v788 = vpop.f32.mrf.mxu0
        %v789 = vadd.f32 %v718, %v788
        %v790 = vpop.f32.mrf.mxu0
        %v791 = vadd.f32 %v718, %v790
        %792 = vmatmul.bf16.gmra.mxu0 %v755
        %v793 = vpop.f32.mrf.mxu0
        %v794 = vadd.f32 %v718, %v793
        %v795 = vpop.f32.mrf.mxu0
        %v796 = vadd.f32 %v718, %v795
        %797 = vmatmul.bf16.gmra.mxu0 %v758
        %v798 = vpop.f32.mrf.mxu0
        %v799 = vadd.f32 %v718, %v798
        %v800 = vpop.f32.mrf.mxu0
        %v801 = vadd.f32 %v718, %v800
        %802 = vmatmul.bf16.gmra.mxu0 %v761
        %v803 = vpop.f32.mrf.mxu0
        %v804 = vadd.f32 %v718, %v803
        %v805 = vpop.f32.mrf.mxu0
        %v806 = vadd.f32 %v718, %v805
        %807 = vmatmul.bf16.gmra.mxu0 %v764
        %v808 = vpop.f32.mrf.mxu0
        %v809 = vadd.f32 %v718, %v808
        %v810 = vpop.f32.mrf.mxu0
        %v811 = vadd.f32 %v718, %v810
        %812 = vmatmul.bf16.gmra.mxu0 %v767
        %v813 = vpop.f32.mrf.mxu0
        %v814 = vadd.f32 %v718, %v813
        %v815 = vpop.f32.mrf.mxu0
        %v816 = vadd.f32 %v718, %v815
        %817 = vdwg.mxu0
        %v818 = vmax.f32 %v779, 0.0
        %v819 = vmax.f32 %v781, 0.0
        %v820 = vmax.f32 %v784, 0.0
        %v821 = vmax.f32 %v786, 0.0
        %v822 = vmax.f32 %v789, 0.0
        %v823 = vmax.f32 %v791, 0.0
        %v824 = vmax.f32 %v794, 0.0
        %v825 = vmax.f32 %v796, 0.0
        %v826 = vmax.f32 %v799, 0.0
        %v827 = vmax.f32 %v801, 0.0
        %v828 = vmax.f32 %v804, 0.0
        %v829 = vmax.f32 %v806, 0.0
        %v830 = vmax.f32 %v809, 0.0
        %v831 = vmax.f32 %v811, 0.0
        %v832 = vmax.f32 %v814, 0.0
        %v833 = vmax.f32 %v816, 0.0
        %v834 = vpack.c.bf16 %v819, %v818
        %v835 = vpack.c.bf16 %v821, %v820
        %v836 = vpack.c.bf16 %v823, %v822
        %v837 = vpack.c.bf16 %v825, %v824
        %v838 = vpack.c.bf16 %v827, %v826
        %v839 = vpack.c.bf16 %v829, %v828
        %v840 = vpack.c.bf16 %v831, %v830
        %v841 = vpack.c.bf16 %v833, %v832
        %v842 = vld [vmem:[#allocation2] sm:$0xff]
        %v843 = vld [vmem:[#allocation2 + $0x8] sm:$0xff]
        %v844 = vld [vmem:[#allocation2 + $0x10] sm:$0xff]
        %v845 = vld [vmem:[#allocation2 + $0x18] sm:$0xff]
        %v846 = vld [vmem:[#allocation2 + $0x20] sm:$0xff]
        %v847 = vld [vmem:[#allocation2 + $0x28] sm:$0xff]
        %v848 = vld [vmem:[#allocation2 + $0x30] sm:$0xff]
        %v849 = vld [vmem:[#allocation2 + $0x38] sm:$0xff]
        %v850 = vld [vmem:[#allocation2 + $0x40] sm:$0xff]
        %v851 = vld [vmem:[#allocation2 + $0x48] sm:$0xff]
        %v852 = vld [vmem:[#allocation2 + $0x50] sm:$0xff]
        %v853 = vld [vmem:[#allocation2 + $0x58] sm:$0xff]
        %v854 = vld [vmem:[#allocation2 + $0x60] sm:$0xff]
        %v855 = vld [vmem:[#allocation2 + $0x68] sm:$0xff]
        %v856 = vld [vmem:[#allocation2 + $0x70] sm:$0xff]
        %v857 = vld [vmem:[#allocation2 + $0x78] sm:$0xff]
        %v858 = vld [vmem:[#allocation2 + $0x80] sm:$0xff]
        %v859 = vld [vmem:[#allocation2 + $0x88] sm:$0xff]
        %v860 = vld [vmem:[#allocation2 + $0x90] sm:$0xff]
        %v861 = vld [vmem:[#allocation2 + $0x98] sm:$0xff]
        %v862 = vld [vmem:[#allocation2 + $0xa0] sm:$0xff]
        %v863 = vld [vmem:[#allocation2 + $0xa8] sm:$0xff]
        %v864 = vld [vmem:[#allocation2 + $0xb0] sm:$0xff]
        %v865 = vld [vmem:[#allocation2 + $0xb8] sm:$0xff]
        %v866 = vld [vmem:[#allocation2 + $0xc0] sm:$0xff]
        %v867 = vld [vmem:[#allocation2 + $0xc8] sm:$0xff]
        %v868 = vld [vmem:[#allocation2 + $0xd0] sm:$0xff]
        %v869 = vld [vmem:[#allocation2 + $0xd8] sm:$0xff]
        %v870 = vld [vmem:[#allocation2 + $0xe0] sm:$0xff]
        %v871 = vld [vmem:[#allocation2 + $0xe8] sm:$0xff]
        %v872 = vld [vmem:[#allocation2 + $0xf0] sm:$0xff]
        %v873 = vld [vmem:[#allocation2 + $0xf8] sm:$0xff]
        %v874 = vld [vmem:[#allocation2 + $0x100] sm:$0xff]
        %v875 = vld [vmem:[#allocation2 + $0x108] sm:$0xff]
        %v876 = vld [vmem:[#allocation2 + $0x110] sm:$0xff]
        %v877 = vld [vmem:[#allocation2 + $0x118] sm:$0xff]
        %v878 = vld [vmem:[#allocation2 + $0x120] sm:$0xff]
        %v879 = vld [vmem:[#allocation2 + $0x128] sm:$0xff]
        %v880 = vld [vmem:[#allocation2 + $0x130] sm:$0xff]
        %v881 = vld [vmem:[#allocation2 + $0x138] sm:$0xff]
        %v882 = vld [vmem:[#allocation2 + $0x140] sm:$0xff]
        %v883 = vld [vmem:[#allocation2 + $0x148] sm:$0xff]
        %v884 = vld [vmem:[#allocation2 + $0x150] sm:$0xff]
        %v885 = vld [vmem:[#allocation2 + $0x158] sm:$0xff]
        %v886 = vld [vmem:[#allocation2 + $0x160] sm:$0xff]
        %v887 = vld [vmem:[#allocation2 + $0x168] sm:$0xff]
        %v888 = vld [vmem:[#allocation2 + $0x170] sm:$0xff]
        %v889 = vld [vmem:[#allocation2 + $0x178] sm:$0xff]
        %v890 = vld [vmem:[#allocation2 + $0x180] sm:$0xff]
        %v891 = vld [vmem:[#allocation2 + $0x188] sm:$0xff]
        %v892 = vld [vmem:[#allocation2 + $0x190] sm:$0xff]
        %v893 = vld [vmem:[#allocation2 + $0x198] sm:$0xff]
        %v894 = vld [vmem:[#allocation2 + $0x1a0] sm:$0xff]
        %v895 = vld [vmem:[#allocation2 + $0x1a8] sm:$0xff]
        %v896 = vld [vmem:[#allocation2 + $0x1b0] sm:$0xff]
        %v897 = vld [vmem:[#allocation2 + $0x1b8] sm:$0xff]
        %v898 = vld [vmem:[#allocation2 + $0x1c0] sm:$0xff]
        %v899 = vld [vmem:[#allocation2 + $0x1c8] sm:$0xff]
        %v900 = vld [vmem:[#allocation2 + $0x1d0] sm:$0xff]
        %v901 = vld [vmem:[#allocation2 + $0x1d8] sm:$0xff]
        %v902 = vld [vmem:[#allocation2 + $0x1e0] sm:$0xff]
        %v903 = vld [vmem:[#allocation2 + $0x1e8] sm:$0xff]
        %v904 = vld [vmem:[#allocation2 + $0x1f0] sm:$0xff]
        %v905 = vld [vmem:[#allocation2 + $0x1f8] sm:$0xff]
        %v906 = vld [vmem:[%s6] sm:$0xff]
        %v908 = vperm.slane %v906, 0
        %v909 = vperm.slane %v906, 1
        %v910 = vperm.slane %v906, 2
        %v911 = vperm.slane %v906, 3
        %v912 = vperm.slane %v906, 4
        %v913 = vperm.slane %v906, 5
        %v914 = vperm.slane %v906, 6
        %v915 = vperm.slane %v906, 7
        %v988 = vunpack.c.l.b16 %v842
        %v989 = vunpack.c.h.b16 %v842
        %v990 = vunpack.c.l.b16 %v843
        %v991 = vunpack.c.h.b16 %v843
        %v992 = vunpack.c.l.b16 %v844
        %v993 = vunpack.c.h.b16 %v844
        %v994 = vunpack.c.l.b16 %v845
        %v995 = vunpack.c.h.b16 %v845
        %v996 = vunpack.c.l.b16 %v846
        %v997 = vunpack.c.h.b16 %v846
        %v998 = vunpack.c.l.b16 %v847
        %v999 = vunpack.c.h.b16 %v847
        %v1000 = vunpack.c.l.b16 %v848
        %v1001 = vunpack.c.h.b16 %v848
        %v1002 = vunpack.c.l.b16 %v849
        %v1003 = vunpack.c.h.b16 %v849
        %v1004 = vunpack.c.l.b16 %v850
        %v1005 = vunpack.c.h.b16 %v850
        %v1006 = vunpack.c.l.b16 %v851
        %v1007 = vunpack.c.h.b16 %v851
        %v1008 = vunpack.c.l.b16 %v852
        %v1009 = vunpack.c.h.b16 %v852
        %v1010 = vunpack.c.l.b16 %v853
        %v1011 = vunpack.c.h.b16 %v853
        %v1012 = vunpack.c.l.b16 %v854
        %v1013 = vunpack.c.h.b16 %v854
        %v1014 = vunpack.c.l.b16 %v855
        %v1015 = vunpack.c.h.b16 %v855
        %v1016 = vunpack.c.l.b16 %v856
        %v1017 = vunpack.c.h.b16 %v856
        %v1018 = vunpack.c.l.b16 %v857
        %v1019 = vunpack.c.h.b16 %v857
        %v1020 = vunpack.c.l.b16 %v858
        %v1021 = vunpack.c.h.b16 %v858
        %v1022 = vunpack.c.l.b16 %v859
        %v1023 = vunpack.c.h.b16 %v859
        %v1024 = vunpack.c.l.b16 %v860
        %v1025 = vunpack.c.h.b16 %v860
        %v1026 = vunpack.c.l.b16 %v861
        %v1027 = vunpack.c.h.b16 %v861
        %v1028 = vunpack.c.l.b16 %v862
        %v1029 = vunpack.c.h.b16 %v862
        %v1030 = vunpack.c.l.b16 %v863
        %v1031 = vunpack.c.h.b16 %v863
        %v1032 = vunpack.c.l.b16 %v864
        %v1033 = vunpack.c.h.b16 %v864
        %v1034 = vunpack.c.l.b16 %v865
        %v1035 = vunpack.c.h.b16 %v865
        %v1036 = vunpack.c.l.b16 %v866
        %v1037 = vunpack.c.h.b16 %v866
        %v1038 = vunpack.c.l.b16 %v867
        %v1039 = vunpack.c.h.b16 %v867
        %v1040 = vunpack.c.l.b16 %v868
        %v1041 = vunpack.c.h.b16 %v868
        %v1042 = vunpack.c.l.b16 %v869
        %v1043 = vunpack.c.h.b16 %v869
        %v1044 = vunpack.c.l.b16 %v870
        %v1045 = vunpack.c.h.b16 %v870
        %v1046 = vunpack.c.l.b16 %v871
        %v1047 = vunpack.c.h.b16 %v871
        %v1048 = vunpack.c.l.b16 %v872
        %v1049 = vunpack.c.h.b16 %v872
        %v1050 = vunpack.c.l.b16 %v873
        %v1051 = vunpack.c.h.b16 %v873
        %v1052 = vunpack.c.l.b16 %v874
        %v1053 = vunpack.c.h.b16 %v874
        %v1054 = vunpack.c.l.b16 %v875
        %v1055 = vunpack.c.h.b16 %v875
        %v1056 = vunpack.c.l.b16 %v876
        %v1057 = vunpack.c.h.b16 %v876
        %v1058 = vunpack.c.l.b16 %v877
        %v1059 = vunpack.c.h.b16 %v877
        %v1060 = vunpack.c.l.b16 %v878
        %v1061 = vunpack.c.h.b16 %v878
        %v1062 = vunpack.c.l.b16 %v879
        %v1063 = vunpack.c.h.b16 %v879
        %v1064 = vunpack.c.l.b16 %v880
        %v1065 = vunpack.c.h.b16 %v880
        %v1066 = vunpack.c.l.b16 %v881
        %v1067 = vunpack.c.h.b16 %v881
        %v1068 = vunpack.c.l.b16 %v882
        %v1069 = vunpack.c.h.b16 %v882
        %v1070 = vunpack.c.l.b16 %v883
        %v1071 = vunpack.c.h.b16 %v883
        %v1072 = vunpack.c.l.b16 %v884
        %v1073 = vunpack.c.h.b16 %v884
        %v1074 = vunpack.c.l.b16 %v885
        %v1075 = vunpack.c.h.b16 %v885
        %v1076 = vunpack.c.l.b16 %v886
        %v1077 = vunpack.c.h.b16 %v886
        %v1078 = vunpack.c.l.b16 %v887
        %v1079 = vunpack.c.h.b16 %v887
        %v1080 = vunpack.c.l.b16 %v888
        %v1081 = vunpack.c.h.b16 %v888
        %v1082 = vunpack.c.l.b16 %v889
        %v1083 = vunpack.c.h.b16 %v889
        %v1084 = vunpack.c.l.b16 %v890
        %v1085 = vunpack.c.h.b16 %v890
        %v1086 = vunpack.c.l.b16 %v891
        %v1087 = vunpack.c.h.b16 %v891
        %v1088 = vunpack.c.l.b16 %v892
        %v1089 = vunpack.c.h.b16 %v892
        %v1090 = vunpack.c.l.b16 %v893
        %v1091 = vunpack.c.h.b16 %v893
        %v1092 = vunpack.c.l.b16 %v894
        %v1093 = vunpack.c.h.b16 %v894
        %v1094 = vunpack.c.l.b16 %v895
        %v1095 = vunpack.c.h.b16 %v895
        %v1096 = vunpack.c.l.b16 %v896
        %v1097 = vunpack.c.h.b16 %v896
        %v1098 = vunpack.c.l.b16 %v897
        %v1099 = vunpack.c.h.b16 %v897
        %v1100 = vunpack.c.l.b16 %v898
        %v1101 = vunpack.c.h.b16 %v898
        %v1102 = vunpack.c.l.b16 %v899
        %v1103 = vunpack.c.h.b16 %v899
        %v1104 = vunpack.c.l.b16 %v900
        %v1105 = vunpack.c.h.b16 %v900
        %v1106 = vunpack.c.l.b16 %v901
        %v1107 = vunpack.c.h.b16 %v901
        %v1108 = vunpack.c.l.b16 %v902
        %v1109 = vunpack.c.h.b16 %v902
        %v1110 = vunpack.c.l.b16 %v903
        %v1111 = vunpack.c.h.b16 %v903
        %v1112 = vunpack.c.l.b16 %v904
        %v1113 = vunpack.c.h.b16 %v904
        %v1114 = vunpack.c.l.b16 %v905
        %v1115 = vunpack.c.h.b16 %v905
        %v1116 = vpack.c.b16 %v996, %v988
        %v1117 = vpack.c.b16 %v997, %v989
        %v1118 = vpack.c.b16 %v998, %v990
        %v1119 = vpack.c.b16 %v999, %v991
        %v1120 = vpack.c.b16 %v1000, %v992
        %v1121 = vpack.c.b16 %v1001, %v993
        %v1122 = vpack.c.b16 %v1002, %v994
        %v1123 = vpack.c.b16 %v1003, %v995
        %v1124 = vpack.c.b16 %v1012, %v1004
        %v1125 = vpack.c.b16 %v1013, %v1005
        %v1126 = vpack.c.b16 %v1014, %v1006
        %v1127 = vpack.c.b16 %v1015, %v1007
        %v1128 = vpack.c.b16 %v1016, %v1008
        %v1129 = vpack.c.b16 %v1017, %v1009
        %v1130 = vpack.c.b16 %v1018, %v1010
        %v1131 = vpack.c.b16 %v1019, %v1011
        %v1132 = vpack.c.b16 %v1028, %v1020
        %v1133 = vpack.c.b16 %v1029, %v1021
        %v1134 = vpack.c.b16 %v1030, %v1022
        %v1135 = vpack.c.b16 %v1031, %v1023
        %v1136 = vpack.c.b16 %v1032, %v1024
        %v1137 = vpack.c.b16 %v1033, %v1025
        %v1138 = vpack.c.b16 %v1034, %v1026
        %v1139 = vpack.c.b16 %v1035, %v1027
        %v1140 = vpack.c.b16 %v1044, %v1036
        %v1141 = vpack.c.b16 %v1045, %v1037
        %v1142 = vpack.c.b16 %v1046, %v1038
        %v1143 = vpack.c.b16 %v1047, %v1039
        %v1144 = vpack.c.b16 %v1048, %v1040
        %v1145 = vpack.c.b16 %v1049, %v1041
        %v1146 = vpack.c.b16 %v1050, %v1042
        %v1147 = vpack.c.b16 %v1051, %v1043
        %v1148 = vpack.c.b16 %v1060, %v1052
        %v1149 = vpack.c.b16 %v1061, %v1053
        %v1150 = vpack.c.b16 %v1062, %v1054
        %v1151 = vpack.c.b16 %v1063, %v1055
        %v1152 = vpack.c.b16 %v1064, %v1056
        %v1153 = vpack.c.b16 %v1065, %v1057
        %v1154 = vpack.c.b16 %v1066, %v1058
        %v1155 = vpack.c.b16 %v1067, %v1059
        %v1156 = vpack.c.b16 %v1076, %v1068
        %v1157 = vpack.c.b16 %v1077, %v1069
        %v1158 = vpack.c.b16 %v1078, %v1070
        %v1159 = vpack.c.b16 %v1079, %v1071
        %v1160 = vpack.c.b16 %v1080, %v1072
        %v1161 = vpack.c.b16 %v1081, %v1073
        %v1162 = vpack.c.b16 %v1082, %v1074
        %v1163 = vpack.c.b16 %v1083, %v1075
        %v1164 = vpack.c.b16 %v1092, %v1084
        %v1165 = vpack.c.b16 %v1093, %v1085
        %v1166 = vpack.c.b16 %v1094, %v1086
        %v1167 = vpack.c.b16 %v1095, %v1087
        %v1168 = vpack.c.b16 %v1096, %v1088
        %v1169 = vpack.c.b16 %v1097, %v1089
        %v1170 = vpack.c.b16 %v1098, %v1090
        %v1171 = vpack.c.b16 %v1099, %v1091
        %v1172 = vpack.c.b16 %v1108, %v1100
        %v1173 = vpack.c.b16 %v1109, %v1101
        %v1174 = vpack.c.b16 %v1110, %v1102
        %v1175 = vpack.c.b16 %v1111, %v1103
        %v1176 = vpack.c.b16 %v1112, %v1104
        %v1177 = vpack.c.b16 %v1113, %v1105
        %v1178 = vpack.c.b16 %v1114, %v1106
        %v1179 = vpack.c.b16 %v1115, %v1107
        %1244 = vmatpush.bf16.msra.mxu0 %v1172
        %1245 = vmatpush.bf16.msra.mxu0 %v1164
        %1246 = vmatpush.bf16.msra.mxu0 %v1156
        %1247 = vmatpush.bf16.msra.mxu0 %v1148
        %1248 = vmatpush.bf16.msra.mxu0 %v1140
        %1249 = vmatpush.bf16.msra.mxu0 %v1132
        %1250 = vmatpush.bf16.msra.mxu0 %v1124
        %1251 = vmatpush.bf16.msra.mxu0 %v1116
        %1252 = vmatmul.bf16.gmra.mxu0 %v834
        %v1253 = vpop.f32.mrf.mxu0
        %v1254 = vadd.f32 %v908, %v1253
        %v1255 = vpop.f32.mrf.mxu0
        %v1256 = vadd.f32 %v908, %v1255
        %1257 = vmatmul.bf16.gmra.mxu0 %v835
        %v1258 = vpop.f32.mrf.mxu0
        %v1259 = vadd.f32 %v908, %v1258
        %v1260 = vpop.f32.mrf.mxu0
        %v1261 = vadd.f32 %v908, %v1260
        %1262 = vmatmul.bf16.gmra.mxu0 %v836
        %v1263 = vpop.f32.mrf.mxu0
        %v1264 = vadd.f32 %v908, %v1263
        %v1265 = vpop.f32.mrf.mxu0
        %v1266 = vadd.f32 %v908, %v1265
        %1267 = vmatmul.bf16.gmra.mxu0 %v837
        %v1268 = vpop.f32.mrf.mxu0
        %v1269 = vadd.f32 %v908, %v1268
        %v1270 = vpop.f32.mrf.mxu0
        %v1271 = vadd.f32 %v908, %v1270
        %1272 = vmatmul.bf16.gmra.mxu0 %v838
        %v1273 = vpop.f32.mrf.mxu0
        %v1274 = vadd.f32 %v908, %v1273
        %v1275 = vpop.f32.mrf.mxu0
        %v1276 = vadd.f32 %v908, %v1275
        %1277 = vmatmul.bf16.gmra.mxu0 %v839
        %v1278 = vpop.f32.mrf.mxu0
        %v1279 = vadd.f32 %v908, %v1278
        %v1280 = vpop.f32.mrf.mxu0
        %v1281 = vadd.f32 %v908, %v1280
        %1282 = vmatmul.bf16.gmra.mxu0 %v840
        %v1283 = vpop.f32.mrf.mxu0
        %v1284 = vadd.f32 %v908, %v1283
        %v1285 = vpop.f32.mrf.mxu0
        %v1286 = vadd.f32 %v908, %v1285
        %1287 = vmatmul.bf16.gmra.mxu0 %v841
        %v1288 = vpop.f32.mrf.mxu0
        %v1289 = vadd.f32 %v908, %v1288
        %v1290 = vpop.f32.mrf.mxu0
        %v1291 = vadd.f32 %v908, %v1290
        %1292 = vdwg.mxu0
        %1293 = vmatpush.bf16.msra.mxu0 %v1173
        %1294 = vmatpush.bf16.msra.mxu0 %v1165
        %1295 = vmatpush.bf16.msra.mxu0 %v1157
        %1296 = vmatpush.bf16.msra.mxu0 %v1149
        %1297 = vmatpush.bf16.msra.mxu0 %v1141
        %1298 = vmatpush.bf16.msra.mxu0 %v1133
        %1299 = vmatpush.bf16.msra.mxu0 %v1125
        %1300 = vmatpush.bf16.msra.mxu0 %v1117
        %1301 = vmatmul.bf16.gmra.mxu0 %v834
        %v1302 = vpop.f32.mrf.mxu0
        %v1303 = vadd.f32 %v909, %v1302
        %v1304 = vpop.f32.mrf.mxu0
        %v1305 = vadd.f32 %v909, %v1304
        %1306 = vmatmul.bf16.gmra.mxu0 %v835
        %v1307 = vpop.f32.mrf.mxu0
        %v1308 = vadd.f32 %v909, %v1307
        %v1309 = vpop.f32.mrf.mxu0
        %v1310 = vadd.f32 %v909, %v1309
        %1311 = vmatmul.bf16.gmra.mxu0 %v836
        %v1312 = vpop.f32.mrf.mxu0
        %v1313 = vadd.f32 %v909, %v1312
        %v1314 = vpop.f32.mrf.mxu0
        %v1315 = vadd.f32 %v909, %v1314
        %1316 = vmatmul.bf16.gmra.mxu0 %v837
        %v1317 = vpop.f32.mrf.mxu0
        %v1318 = vadd.f32 %v909, %v1317
        %v1319 = vpop.f32.mrf.mxu0
        %v1320 = vadd.f32 %v909, %v1319
        %1321 = vmatmul.bf16.gmra.mxu0 %v838
        %v1322 = vpop.f32.mrf.mxu0
        %v1323 = vadd.f32 %v909, %v1322
        %v1324 = vpop.f32.mrf.mxu0
        %v1325 = vadd.f32 %v909, %v1324
        %1326 = vmatmul.bf16.gmra.mxu0 %v839
        %v1327 = vpop.f32.mrf.mxu0
        %v1328 = vadd.f32 %v909, %v1327
        %v1329 = vpop.f32.mrf.mxu0
        %v1330 = vadd.f32 %v909, %v1329
        %1331 = vmatmul.bf16.gmra.mxu0 %v840
        %v1332 = vpop.f32.mrf.mxu0
        %v1333 = vadd.f32 %v909, %v1332
        %v1334 = vpop.f32.mrf.mxu0
        %v1335 = vadd.f32 %v909, %v1334
        %1336 = vmatmul.bf16.gmra.mxu0 %v841
        %v1337 = vpop.f32.mrf.mxu0
        %v1338 = vadd.f32 %v909, %v1337
        %v1339 = vpop.f32.mrf.mxu0
        %v1340 = vadd.f32 %v909, %v1339
        %1341 = vdwg.mxu0
        %1342 = vmatpush.bf16.msra.mxu0 %v1174
        %1343 = vmatpush.bf16.msra.mxu0 %v1166
        %1344 = vmatpush.bf16.msra.mxu0 %v1158
        %1345 = vmatpush.bf16.msra.mxu0 %v1150
        %1346 = vmatpush.bf16.msra.mxu0 %v1142
        %1347 = vmatpush.bf16.msra.mxu0 %v1134
        %1348 = vmatpush.bf16.msra.mxu0 %v1126
        %1349 = vmatpush.bf16.msra.mxu0 %v1118
        %1350 = vmatmul.bf16.gmra.mxu0 %v834
        %v1351 = vpop.f32.mrf.mxu0
        %v1352 = vadd.f32 %v910, %v1351
        %v1353 = vpop.f32.mrf.mxu0
        %v1354 = vadd.f32 %v910, %v1353
        %1355 = vmatmul.bf16.gmra.mxu0 %v835
        %v1356 = vpop.f32.mrf.mxu0
        %v1357 = vadd.f32 %v910, %v1356
        %v1358 = vpop.f32.mrf.mxu0
        %v1359 = vadd.f32 %v910, %v1358
        %1360 = vmatmul.bf16.gmra.mxu0 %v836
        %v1361 = vpop.f32.mrf.mxu0
        %v1362 = vadd.f32 %v910, %v1361
        %v1363 = vpop.f32.mrf.mxu0
        %v1364 = vadd.f32 %v910, %v1363
        %1365 = vmatmul.bf16.gmra.mxu0 %v837
        %v1366 = vpop.f32.mrf.mxu0
        %v1367 = vadd.f32 %v910, %v1366
        %v1368 = vpop.f32.mrf.mxu0
        %v1369 = vadd.f32 %v910, %v1368
        %1370 = vmatmul.bf16.gmra.mxu0 %v838
        %v1371 = vpop.f32.mrf.mxu0
        %v1372 = vadd.f32 %v910, %v1371
        %v1373 = vpop.f32.mrf.mxu0
        %v1374 = vadd.f32 %v910, %v1373
        %1375 = vmatmul.bf16.gmra.mxu0 %v839
        %v1376 = vpop.f32.mrf.mxu0
        %v1377 = vadd.f32 %v910, %v1376
        %v1378 = vpop.f32.mrf.mxu0
        %v1379 = vadd.f32 %v910, %v1378
        %1380 = vmatmul.bf16.gmra.mxu0 %v840
        %v1381 = vpop.f32.mrf.mxu0
        %v1382 = vadd.f32 %v910, %v1381
        %v1383 = vpop.f32.mrf.mxu0
        %v1384 = vadd.f32 %v910, %v1383
        %1385 = vmatmul.bf16.gmra.mxu0 %v841
        %v1386 = vpop.f32.mrf.mxu0
        %v1387 = vadd.f32 %v910, %v1386
        %v1388 = vpop.f32.mrf.mxu0
        %v1389 = vadd.f32 %v910, %v1388
        %1390 = vdwg.mxu0
        %1391 = vmatpush.bf16.msra.mxu0 %v1175
        %1392 = vmatpush.bf16.msra.mxu0 %v1167
        %1393 = vmatpush.bf16.msra.mxu0 %v1159
        %1394 = vmatpush.bf16.msra.mxu0 %v1151
        %1395 = vmatpush.bf16.msra.mxu0 %v1143
        %1396 = vmatpush.bf16.msra.mxu0 %v1135
        %1397 = vmatpush.bf16.msra.mxu0 %v1127
        %1398 = vmatpush.bf16.msra.mxu0 %v1119
        %1399 = vmatmul.bf16.gmra.mxu0 %v834
        %v1400 = vpop.f32.mrf.mxu0
        %v1401 = vadd.f32 %v911, %v1400
        %v1402 = vpop.f32.mrf.mxu0
        %v1403 = vadd.f32 %v911, %v1402
        %1404 = vmatmul.bf16.gmra.mxu0 %v835
        %v1405 = vpop.f32.mrf.mxu0
        %v1406 = vadd.f32 %v911, %v1405
        %v1407 = vpop.f32.mrf.mxu0
        %v1408 = vadd.f32 %v911, %v1407
        %1409 = vmatmul.bf16.gmra.mxu0 %v836
        %v1410 = vpop.f32.mrf.mxu0
        %v1411 = vadd.f32 %v911, %v1410
        %v1412 = vpop.f32.mrf.mxu0
        %v1413 = vadd.f32 %v911, %v1412
        %1414 = vmatmul.bf16.gmra.mxu0 %v837
        %v1415 = vpop.f32.mrf.mxu0
        %v1416 = vadd.f32 %v911, %v1415
        %v1417 = vpop.f32.mrf.mxu0
        %v1418 = vadd.f32 %v911, %v1417
        %1419 = vmatmul.bf16.gmra.mxu0 %v838
        %v1420 = vpop.f32.mrf.mxu0
        %v1421 = vadd.f32 %v911, %v1420
        %v1422 = vpop.f32.mrf.mxu0
        %v1423 = vadd.f32 %v911, %v1422
        %1424 = vmatmul.bf16.gmra.mxu0 %v839
        %v1425 = vpop.f32.mrf.mxu0
        %v1426 = vadd.f32 %v911, %v1425
        %v1427 = vpop.f32.mrf.mxu0
        %v1428 = vadd.f32 %v911, %v1427
        %1429 = vmatmul.bf16.gmra.mxu0 %v840
        %v1430 = vpop.f32.mrf.mxu0
        %v1431 = vadd.f32 %v911, %v1430
        %v1432 = vpop.f32.mrf.mxu0
        %v1433 = vadd.f32 %v911, %v1432
        %1434 = vmatmul.bf16.gmra.mxu0 %v841
        %v1435 = vpop.f32.mrf.mxu0
        %v1436 = vadd.f32 %v911, %v1435
        %v1437 = vpop.f32.mrf.mxu0
        %v1438 = vadd.f32 %v911, %v1437
        %1439 = vdwg.mxu0
        %1440 = vmatpush.bf16.msra.mxu0 %v1176
        %1441 = vmatpush.bf16.msra.mxu0 %v1168
        %1442 = vmatpush.bf16.msra.mxu0 %v1160
        %1443 = vmatpush.bf16.msra.mxu0 %v1152
        %1444 = vmatpush.bf16.msra.mxu0 %v1144
        %1445 = vmatpush.bf16.msra.mxu0 %v1136
        %1446 = vmatpush.bf16.msra.mxu0 %v1128
        %1447 = vmatpush.bf16.msra.mxu0 %v1120
        %1448 = vmatmul.bf16.gmra.mxu0 %v834
        %v1449 = vpop.f32.mrf.mxu0
        %v1450 = vadd.f32 %v912, %v1449
        %v1451 = vpop.f32.mrf.mxu0
        %v1452 = vadd.f32 %v912, %v1451
        %1453 = vmatmul.bf16.gmra.mxu0 %v835
        %v1454 = vpop.f32.mrf.mxu0
        %v1455 = vadd.f32 %v912, %v1454
        %v1456 = vpop.f32.mrf.mxu0
        %v1457 = vadd.f32 %v912, %v1456
        %1458 = vmatmul.bf16.gmra.mxu0 %v836
        %v1459 = vpop.f32.mrf.mxu0
        %v1460 = vadd.f32 %v912, %v1459
        %v1461 = vpop.f32.mrf.mxu0
        %v1462 = vadd.f32 %v912, %v1461
        %1463 = vmatmul.bf16.gmra.mxu0 %v837
        %v1464 = vpop.f32.mrf.mxu0
        %v1465 = vadd.f32 %v912, %v1464
        %v1466 = vpop.f32.mrf.mxu0
        %v1467 = vadd.f32 %v912, %v1466
        %1468 = vmatmul.bf16.gmra.mxu0 %v838
        %v1469 = vpop.f32.mrf.mxu0
        %v1470 = vadd.f32 %v912, %v1469
        %v1471 = vpop.f32.mrf.mxu0
        %v1472 = vadd.f32 %v912, %v1471
        %1473 = vmatmul.bf16.gmra.mxu0 %v839
        %v1474 = vpop.f32.mrf.mxu0
        %v1475 = vadd.f32 %v912, %v1474
        %v1476 = vpop.f32.mrf.mxu0
        %v1477 = vadd.f32 %v912, %v1476
        %1478 = vmatmul.bf16.gmra.mxu0 %v840
        %v1479 = vpop.f32.mrf.mxu0
        %v1480 = vadd.f32 %v912, %v1479
        %v1481 = vpop.f32.mrf.mxu0
        %v1482 = vadd.f32 %v912, %v1481
        %1483 = vmatmul.bf16.gmra.mxu0 %v841
        %v1484 = vpop.f32.mrf.mxu0
        %v1485 = vadd.f32 %v912, %v1484
        %v1486 = vpop.f32.mrf.mxu0
        %v1487 = vadd.f32 %v912, %v1486
        %1488 = vdwg.mxu0
        %1489 = vmatpush.bf16.msra.mxu0 %v1177
        %1490 = vmatpush.bf16.msra.mxu0 %v1169
        %1491 = vmatpush.bf16.msra.mxu0 %v1161
        %1492 = vmatpush.bf16.msra.mxu0 %v1153
        %1493 = vmatpush.bf16.msra.mxu0 %v1145
        %1494 = vmatpush.bf16.msra.mxu0 %v1137
        %1495 = vmatpush.bf16.msra.mxu0 %v1129
        %1496 = vmatpush.bf16.msra.mxu0 %v1121
        %1497 = vmatmul.bf16.gmra.mxu0 %v834
        %v1498 = vpop.f32.mrf.mxu0
        %v1499 = vadd.f32 %v913, %v1498
        %v1500 = vpop.f32.mrf.mxu0
        %v1501 = vadd.f32 %v913, %v1500
        %1502 = vmatmul.bf16.gmra.mxu0 %v835
        %v1503 = vpop.f32.mrf.mxu0
        %v1504 = vadd.f32 %v913, %v1503
        %v1505 = vpop.f32.mrf.mxu0
        %v1506 = vadd.f32 %v913, %v1505
        %1507 = vmatmul.bf16.gmra.mxu0 %v836
        %v1508 = vpop.f32.mrf.mxu0
        %v1509 = vadd.f32 %v913, %v1508
        %v1510 = vpop.f32.mrf.mxu0
        %v1511 = vadd.f32 %v913, %v1510
        %1512 = vmatmul.bf16.gmra.mxu0 %v837
        %v1513 = vpop.f32.mrf.mxu0
        %v1514 = vadd.f32 %v913, %v1513
        %v1515 = vpop.f32.mrf.mxu0
        %v1516 = vadd.f32 %v913, %v1515
        %1517 = vmatmul.bf16.gmra.mxu0 %v838
        %v1518 = vpop.f32.mrf.mxu0
        %v1519 = vadd.f32 %v913, %v1518
        %v1520 = vpop.f32.mrf.mxu0
        %v1521 = vadd.f32 %v913, %v1520
        %1522 = vmatmul.bf16.gmra.mxu0 %v839
        %v1523 = vpop.f32.mrf.mxu0
        %v1524 = vadd.f32 %v913, %v1523
        %v1525 = vpop.f32.mrf.mxu0
        %v1526 = vadd.f32 %v913, %v1525
        %1527 = vmatmul.bf16.gmra.mxu0 %v840
        %v1528 = vpop.f32.mrf.mxu0
        %v1529 = vadd.f32 %v913, %v1528
        %v1530 = vpop.f32.mrf.mxu0
        %v1531 = vadd.f32 %v913, %v1530
        %1532 = vmatmul.bf16.gmra.mxu0 %v841
        %v1533 = vpop.f32.mrf.mxu0
        %v1534 = vadd.f32 %v913, %v1533
        %v1535 = vpop.f32.mrf.mxu0
        %v1536 = vadd.f32 %v913, %v1535
        %1537 = vdwg.mxu0
        %1538 = vmatpush.bf16.msra.mxu0 %v1178
        %1539 = vmatpush.bf16.msra.mxu0 %v1170
        %1540 = vmatpush.bf16.msra.mxu0 %v1162
        %1541 = vmatpush.bf16.msra.mxu0 %v1154
        %1542 = vmatpush.bf16.msra.mxu0 %v1146
        %1543 = vmatpush.bf16.msra.mxu0 %v1138
        %1544 = vmatpush.bf16.msra.mxu0 %v1130
        %1545 = vmatpush.bf16.msra.mxu0 %v1122
        %1546 = vmatmul.bf16.gmra.mxu0 %v834
        %v1547 = vpop.f32.mrf.mxu0
        %v1548 = vadd.f32 %v914, %v1547
        %v1549 = vpop.f32.mrf.mxu0
        %v1550 = vadd.f32 %v914, %v1549
        %1551 = vmatmul.bf16.gmra.mxu0 %v835
        %v1552 = vpop.f32.mrf.mxu0
        %v1553 = vadd.f32 %v914, %v1552
        %v1554 = vpop.f32.mrf.mxu0
        %v1555 = vadd.f32 %v914, %v1554
        %1556 = vmatmul.bf16.gmra.mxu0 %v836
        %v1557 = vpop.f32.mrf.mxu0
        %v1558 = vadd.f32 %v914, %v1557
        %v1559 = vpop.f32.mrf.mxu0
        %v1560 = vadd.f32 %v914, %v1559
        %1561 = vmatmul.bf16.gmra.mxu0 %v837
        %v1562 = vpop.f32.mrf.mxu0
        %v1563 = vadd.f32 %v914, %v1562
        %v1564 = vpop.f32.mrf.mxu0
        %v1565 = vadd.f32 %v914, %v1564
        %1566 = vmatmul.bf16.gmra.mxu0 %v838
        %v1567 = vpop.f32.mrf.mxu0
        %v1568 = vadd.f32 %v914, %v1567
        %v1569 = vpop.f32.mrf.mxu0
        %v1570 = vadd.f32 %v914, %v1569
        %1571 = vmatmul.bf16.gmra.mxu0 %v839
        %v1572 = vpop.f32.mrf.mxu0
        %v1573 = vadd.f32 %v914, %v1572
        %v1574 = vpop.f32.mrf.mxu0
        %v1575 = vadd.f32 %v914, %v1574
        %1576 = vmatmul.bf16.gmra.mxu0 %v840
        %v1577 = vpop.f32.mrf.mxu0
        %v1578 = vadd.f32 %v914, %v1577
        %v1579 = vpop.f32.mrf.mxu0
        %v1580 = vadd.f32 %v914, %v1579
        %1581 = vmatmul.bf16.gmra.mxu0 %v841
        %v1582 = vpop.f32.mrf.mxu0
        %v1583 = vadd.f32 %v914, %v1582
        %v1584 = vpop.f32.mrf.mxu0
        %v1585 = vadd.f32 %v914, %v1584
        %1586 = vdwg.mxu0
        %1587 = vmatpush.bf16.msra.mxu0 %v1179
        %1588 = vmatpush.bf16.msra.mxu0 %v1171
        %1589 = vmatpush.bf16.msra.mxu0 %v1163
        %1590 = vmatpush.bf16.msra.mxu0 %v1155
        %1591 = vmatpush.bf16.msra.mxu0 %v1147
        %1592 = vmatpush.bf16.msra.mxu0 %v1139
        %1593 = vmatpush.bf16.msra.mxu0 %v1131
        %1594 = vmatpush.bf16.msra.mxu0 %v1123
        %1595 = vmatmul.bf16.gmra.mxu0 %v834
        %v1596 = vpop.f32.mrf.mxu0
        %v1597 = vadd.f32 %v915, %v1596
        %v1598 = vpop.f32.mrf.mxu0
        %v1599 = vadd.f32 %v915, %v1598
        %1600 = vmatmul.bf16.gmra.mxu0 %v835
        %v1601 = vpop.f32.mrf.mxu0
        %v1602 = vadd.f32 %v915, %v1601
        %v1603 = vpop.f32.mrf.mxu0
        %v1604 = vadd.f32 %v915, %v1603
        %1605 = vmatmul.bf16.gmra.mxu0 %v836
        %v1606 = vpop.f32.mrf.mxu0
        %v1607 = vadd.f32 %v915, %v1606
        %v1608 = vpop.f32.mrf.mxu0
        %v1609 = vadd.f32 %v915, %v1608
        %1610 = vmatmul.bf16.gmra.mxu0 %v837
        %v1611 = vpop.f32.mrf.mxu0
        %v1612 = vadd.f32 %v915, %v1611
        %v1613 = vpop.f32.mrf.mxu0
        %v1614 = vadd.f32 %v915, %v1613
        %1615 = vmatmul.bf16.gmra.mxu0 %v838
        %v1616 = vpop.f32.mrf.mxu0
        %v1617 = vadd.f32 %v915, %v1616
        %v1618 = vpop.f32.mrf.mxu0
        %v1619 = vadd.f32 %v915, %v1618
        %1620 = vmatmul.bf16.gmra.mxu0 %v839
        %v1621 = vpop.f32.mrf.mxu0
        %v1622 = vadd.f32 %v915, %v1621
        %v1623 = vpop.f32.mrf.mxu0
        %v1624 = vadd.f32 %v915, %v1623
        %1625 = vmatmul.bf16.gmra.mxu0 %v840
        %v1626 = vpop.f32.mrf.mxu0
        %v1627 = vadd.f32 %v915, %v1626
        %v1628 = vpop.f32.mrf.mxu0
        %v1629 = vadd.f32 %v915, %v1628
        %1630 = vmatmul.bf16.gmra.mxu0 %v841
        %v1631 = vpop.f32.mrf.mxu0
        %v1632 = vadd.f32 %v915, %v1631
        %v1633 = vpop.f32.mrf.mxu0
        %v1634 = vadd.f32 %v915, %v1633
        %1635 = vdwg.mxu0
        %v1636 = vmax.f32 %v1254, 0.0
        %v1637 = vmax.f32 %v1303, 0.0
        %v1638 = vmax.f32 %v1352, 0.0
        %v1639 = vmax.f32 %v1401, 0.0
        %v1640 = vmax.f32 %v1450, 0.0
        %v1641 = vmax.f32 %v1499, 0.0
        %v1642 = vmax.f32 %v1548, 0.0
        %v1643 = vmax.f32 %v1597, 0.0
        %v1644 = vmax.f32 %v1256, 0.0
        %v1645 = vmax.f32 %v1305, 0.0
        %v1646 = vmax.f32 %v1354, 0.0
        %v1647 = vmax.f32 %v1403, 0.0
        %v1648 = vmax.f32 %v1452, 0.0
        %v1649 = vmax.f32 %v1501, 0.0
        %v1650 = vmax.f32 %v1550, 0.0
        %v1651 = vmax.f32 %v1599, 0.0
        %v1652 = vmax.f32 %v1259, 0.0
        %v1653 = vmax.f32 %v1308, 0.0
        %v1654 = vmax.f32 %v1357, 0.0
        %v1655 = vmax.f32 %v1406, 0.0
        %v1656 = vmax.f32 %v1455, 0.0
        %v1657 = vmax.f32 %v1504, 0.0
        %v1658 = vmax.f32 %v1553, 0.0
        %v1659 = vmax.f32 %v1602, 0.0
        %v1660 = vmax.f32 %v1261, 0.0
        %v1661 = vmax.f32 %v1310, 0.0
        %v1662 = vmax.f32 %v1359, 0.0
        %v1663 = vmax.f32 %v1408, 0.0
        %v1664 = vmax.f32 %v1457, 0.0
        %v1665 = vmax.f32 %v1506, 0.0
        %v1666 = vmax.f32 %v1555, 0.0
        %v1667 = vmax.f32 %v1604, 0.0
        %v1668 = vmax.f32 %v1264, 0.0
        %v1669 = vmax.f32 %v1313, 0.0
        %v1670 = vmax.f32 %v1362, 0.0
        %v1671 = vmax.f32 %v1411, 0.0
        %v1672 = vmax.f32 %v1460, 0.0
        %v1673 = vmax.f32 %v1509, 0.0
        %v1674 = vmax.f32 %v1558, 0.0
        %v1675 = vmax.f32 %v1607, 0.0
        %v1676 = vmax.f32 %v1266, 0.0
        %v1677 = vmax.f32 %v1315, 0.0
        %v1678 = vmax.f32 %v1364, 0.0
        %v1679 = vmax.f32 %v1413, 0.0
        %v1680 = vmax.f32 %v1462, 0.0
        %v1681 = vmax.f32 %v1511, 0.0
        %v1682 = vmax.f32 %v1560, 0.0
        %v1683 = vmax.f32 %v1609, 0.0
        %v1684 = vmax.f32 %v1269, 0.0
        %v1685 = vmax.f32 %v1318, 0.0
        %v1686 = vmax.f32 %v1367, 0.0
        %v1687 = vmax.f32 %v1416, 0.0
        %v1688 = vmax.f32 %v1465, 0.0
        %v1689 = vmax.f32 %v1514, 0.0
        %v1690 = vmax.f32 %v1563, 0.0
        %v1691 = vmax.f32 %v1612, 0.0
        %v1692 = vmax.f32 %v1271, 0.0
        %v1693 = vmax.f32 %v1320, 0.0
        %v1694 = vmax.f32 %v1369, 0.0
        %v1695 = vmax.f32 %v1418, 0.0
        %v1696 = vmax.f32 %v1467, 0.0
        %v1697 = vmax.f32 %v1516, 0.0
        %v1698 = vmax.f32 %v1565, 0.0
        %v1699 = vmax.f32 %v1614, 0.0
        %v1700 = vmax.f32 %v1274, 0.0
        %v1701 = vmax.f32 %v1323, 0.0
        %v1702 = vmax.f32 %v1372, 0.0
        %v1703 = vmax.f32 %v1421, 0.0
        %v1704 = vmax.f32 %v1470, 0.0
        %v1705 = vmax.f32 %v1519, 0.0
        %v1706 = vmax.f32 %v1568, 0.0
        %v1707 = vmax.f32 %v1617, 0.0
        %v1708 = vmax.f32 %v1276, 0.0
        %v1709 = vmax.f32 %v1325, 0.0
        %v1710 = vmax.f32 %v1374, 0.0
        %v1711 = vmax.f32 %v1423, 0.0
        %v1712 = vmax.f32 %v1472, 0.0
        %v1713 = vmax.f32 %v1521, 0.0
        %v1714 = vmax.f32 %v1570, 0.0
        %v1715 = vmax.f32 %v1619, 0.0
        %v1716 = vmax.f32 %v1279, 0.0
        %v1717 = vmax.f32 %v1328, 0.0
        %v1718 = vmax.f32 %v1377, 0.0
        %v1719 = vmax.f32 %v1426, 0.0
        %v1720 = vmax.f32 %v1475, 0.0
        %v1721 = vmax.f32 %v1524, 0.0
        %v1722 = vmax.f32 %v1573, 0.0
        %v1723 = vmax.f32 %v1622, 0.0
        %v1724 = vmax.f32 %v1281, 0.0
        %v1725 = vmax.f32 %v1330, 0.0
        %v1726 = vmax.f32 %v1379, 0.0
        %v1727 = vmax.f32 %v1428, 0.0
        %v1728 = vmax.f32 %v1477, 0.0
        %v1729 = vmax.f32 %v1526, 0.0
        %v1730 = vmax.f32 %v1575, 0.0
        %v1731 = vmax.f32 %v1624, 0.0
        %v1732 = vmax.f32 %v1284, 0.0
        %v1733 = vmax.f32 %v1333, 0.0
        %v1734 = vmax.f32 %v1382, 0.0
        %v1735 = vmax.f32 %v1431, 0.0
        %v1736 = vmax.f32 %v1480, 0.0
        %v1737 = vmax.f32 %v1529, 0.0
        %v1738 = vmax.f32 %v1578, 0.0
        %v1739 = vmax.f32 %v1627, 0.0
        %v1740 = vmax.f32 %v1286, 0.0
        %v1741 = vmax.f32 %v1335, 0.0
        %v1742 = vmax.f32 %v1384, 0.0
        %v1743 = vmax.f32 %v1433, 0.0
        %v1744 = vmax.f32 %v1482, 0.0
        %v1745 = vmax.f32 %v1531, 0.0
        %v1746 = vmax.f32 %v1580, 0.0
        %v1747 = vmax.f32 %v1629, 0.0
        %v1748 = vmax.f32 %v1289, 0.0
        %v1749 = vmax.f32 %v1338, 0.0
        %v1750 = vmax.f32 %v1387, 0.0
        %v1751 = vmax.f32 %v1436, 0.0
        %v1752 = vmax.f32 %v1485, 0.0
        %v1753 = vmax.f32 %v1534, 0.0
        %v1754 = vmax.f32 %v1583, 0.0
        %v1755 = vmax.f32 %v1632, 0.0
        %v1756 = vmax.f32 %v1291, 0.0
        %v1757 = vmax.f32 %v1340, 0.0
        %v1758 = vmax.f32 %v1389, 0.0
        %v1759 = vmax.f32 %v1438, 0.0
        %v1760 = vmax.f32 %v1487, 0.0
        %v1761 = vmax.f32 %v1536, 0.0
        %v1762 = vmax.f32 %v1585, 0.0
        %v1763 = vmax.f32 %v1634, 0.0
        %v1764 = vmax.f32 %v1636, %v1644
        %v1765 = vmax.f32 %v1764, %v1652
        %v1766 = vmax.f32 %v1765, %v1660
        %v1767 = vmax.f32 %v1766, %v1668
        %v1768 = vmax.f32 %v1767, %v1676
        %v1769 = vmax.f32 %v1768, %v1684
        %v1770 = vmax.f32 %v1769, %v1692
        %v1771 = vmax.f32 %v1770, %v1700
        %v1772 = vmax.f32 %v1771, %v1708
        %v1773 = vmax.f32 %v1772, %v1716
        %v1774 = vmax.f32 %v1773, %v1724
        %v1775 = vmax.f32 %v1774, %v1732
        %v1776 = vmax.f32 %v1775, %v1740
        %v1777 = vmax.f32 %v1776, %v1748
        %v1778 = vmax.f32 %v1777, %v1756
        %v1779 = vrot.slane %v1778, 4
        %v1780 = vmax.f32 %v1778, %v1779
        %v1781 = vrot.slane %v1780, 2
        %v1782 = vmax.f32 %v1780, %v1781
        %v1783 = vrot.slane %v1782, 1
        %v1784 = vmax.f32 %v1782, %v1783
        %v1785 = vmax.f32 %v1637, %v1645
        %v1786 = vmax.f32 %v1785, %v1653
        %v1787 = vmax.f32 %v1786, %v1661
        %v1788 = vmax.f32 %v1787, %v1669
        %v1789 = vmax.f32 %v1788, %v1677
        %v1790 = vmax.f32 %v1789, %v1685
        %v1791 = vmax.f32 %v1790, %v1693
        %v1792 = vmax.f32 %v1791, %v1701
        %v1793 = vmax.f32 %v1792, %v1709
        %v1794 = vmax.f32 %v1793, %v1717
        %v1795 = vmax.f32 %v1794, %v1725
        %v1796 = vmax.f32 %v1795, %v1733
        %v1797 = vmax.f32 %v1796, %v1741
        %v1798 = vmax.f32 %v1797, %v1749
        %v1799 = vmax.f32 %v1798, %v1757
        %v1800 = vrot.slane %v1799, 4
        %v1801 = vmax.f32 %v1799, %v1800
        %v1802 = vrot.slane %v1801, 2
        %v1803 = vmax.f32 %v1801, %v1802
        %v1804 = vrot.slane %v1803, 1
        %v1805 = vmax.f32 %v1803, %v1804
        %v1806 = vmax.f32 %v1638, %v1646
        %v1807 = vmax.f32 %v1806, %v1654
        %v1808 = vmax.f32 %v1807, %v1662
        %v1809 = vmax.f32 %v1808, %v1670
        %v1810 = vmax.f32 %v1809, %v1678
        %v1811 = vmax.f32 %v1810, %v1686
        %v1812 = vmax.f32 %v1811, %v1694
        %v1813 = vmax.f32 %v1812, %v1702
        %v1814 = vmax.f32 %v1813, %v1710
        %v1815 = vmax.f32 %v1814, %v1718
        %v1816 = vmax.f32 %v1815, %v1726
        %v1817 = vmax.f32 %v1816, %v1734
        %v1818 = vmax.f32 %v1817, %v1742
        %v1819 = vmax.f32 %v1818, %v1750
        %v1820 = vmax.f32 %v1819, %v1758
        %v1821 = vrot.slane %v1820, 4
        %v1822 = vmax.f32 %v1820, %v1821
        %v1823 = vrot.slane %v1822, 2
        %v1824 = vmax.f32 %v1822, %v1823
        %v1825 = vrot.slane %v1824, 1
        %v1826 = vmax.f32 %v1824, %v1825
        %v1827 = vmax.f32 %v1639, %v1647
        %v1828 = vmax.f32 %v1827, %v1655
        %v1829 = vmax.f32 %v1828, %v1663
        %v1830 = vmax.f32 %v1829, %v1671
        %v1831 = vmax.f32 %v1830, %v1679
        %v1832 = vmax.f32 %v1831, %v1687
        %v1833 = vmax.f32 %v1832, %v1695
        %v1834 = vmax.f32 %v1833, %v1703
        %v1835 = vmax.f32 %v1834, %v1711
        %v1836 = vmax.f32 %v1835, %v1719
        %v1837 = vmax.f32 %v1836, %v1727
        %v1838 = vmax.f32 %v1837, %v1735
        %v1839 = vmax.f32 %v1838, %v1743
        %v1840 = vmax.f32 %v1839, %v1751
        %v1841 = vmax.f32 %v1840, %v1759
        %v1842 = vrot.slane %v1841, 4
        %v1843 = vmax.f32 %v1841, %v1842
        %v1844 = vrot.slane %v1843, 2
        %v1845 = vmax.f32 %v1843, %v1844
        %v1846 = vrot.slane %v1845, 1
        %v1847 = vmax.f32 %v1845, %v1846
        %v1848 = vmax.f32 %v1640, %v1648
        %v1849 = vmax.f32 %v1848, %v1656
        %v1850 = vmax.f32 %v1849, %v1664
        %v1851 = vmax.f32 %v1850, %v1672
        %v1852 = vmax.f32 %v1851, %v1680
        %v1853 = vmax.f32 %v1852, %v1688
        %v1854 = vmax.f32 %v1853, %v1696
        %v1855 = vmax.f32 %v1854, %v1704
        %v1856 = vmax.f32 %v1855, %v1712
        %v1857 = vmax.f32 %v1856, %v1720
        %v1858 = vmax.f32 %v1857, %v1728
        %v1859 = vmax.f32 %v1858, %v1736
        %v1860 = vmax.f32 %v1859, %v1744
        %v1861 = vmax.f32 %v1860, %v1752
        %v1862 = vmax.f32 %v1861, %v1760
        %v1863 = vrot.slane %v1862, 4
        %v1864 = vmax.f32 %v1862, %v1863
        %v1865 = vrot.slane %v1864, 2
        %v1866 = vmax.f32 %v1864, %v1865
        %v1867 = vrot.slane %v1866, 1
        %v1868 = vmax.f32 %v1866, %v1867
        %v1869 = vmax.f32 %v1641, %v1649
        %v1870 = vmax.f32 %v1869, %v1657
        %v1871 = vmax.f32 %v1870, %v1665
        %v1872 = vmax.f32 %v1871, %v1673
        %v1873 = vmax.f32 %v1872, %v1681
        %v1874 = vmax.f32 %v1873, %v1689
        %v1875 = vmax.f32 %v1874, %v1697
        %v1876 = vmax.f32 %v1875, %v1705
        %v1877 = vmax.f32 %v1876, %v1713
        %v1878 = vmax.f32 %v1877, %v1721
        %v1879 = vmax.f32 %v1878, %v1729
        %v1880 = vmax.f32 %v1879, %v1737
        %v1881 = vmax.f32 %v1880, %v1745
        %v1882 = vmax.f32 %v1881, %v1753
        %v1883 = vmax.f32 %v1882, %v1761
        %v1884 = vrot.slane %v1883, 4
        %v1885 = vmax.f32 %v1883, %v1884
        %v1886 = vrot.slane %v1885, 2
        %v1887 = vmax.f32 %v1885, %v1886
        %v1888 = vrot.slane %v1887, 1
        %v1889 = vmax.f32 %v1887, %v1888
        %v1890 = vmax.f32 %v1642, %v1650
        %v1891 = vmax.f32 %v1890, %v1658
        %v1892 = vmax.f32 %v1891, %v1666
        %v1893 = vmax.f32 %v1892, %v1674
        %v1894 = vmax.f32 %v1893, %v1682
        %v1895 = vmax.f32 %v1894, %v1690
        %v1896 = vmax.f32 %v1895, %v1698
        %v1897 = vmax.f32 %v1896, %v1706
        %v1898 = vmax.f32 %v1897, %v1714
        %v1899 = vmax.f32 %v1898, %v1722
        %v1900 = vmax.f32 %v1899, %v1730
        %v1901 = vmax.f32 %v1900, %v1738
        %v1902 = vmax.f32 %v1901, %v1746
        %v1903 = vmax.f32 %v1902, %v1754
        %v1904 = vmax.f32 %v1903, %v1762
        %v1905 = vrot.slane %v1904, 4
        %v1906 = vmax.f32 %v1904, %v1905
        %v1907 = vrot.slane %v1906, 2
        %v1908 = vmax.f32 %v1906, %v1907
        %v1909 = vrot.slane %v1908, 1
        %v1910 = vmax.f32 %v1908, %v1909
        %v1911 = vmax.f32 %v1643, %v1651
        %v1912 = vmax.f32 %v1911, %v1659
        %v1913 = vmax.f32 %v1912, %v1667
        %v1914 = vmax.f32 %v1913, %v1675
        %v1915 = vmax.f32 %v1914, %v1683
        %v1916 = vmax.f32 %v1915, %v1691
        %v1917 = vmax.f32 %v1916, %v1699
        %v1918 = vmax.f32 %v1917, %v1707
        %v1919 = vmax.f32 %v1918, %v1715
        %v1920 = vmax.f32 %v1919, %v1723
        %v1921 = vmax.f32 %v1920, %v1731
        %v1922 = vmax.f32 %v1921, %v1739
        %v1923 = vmax.f32 %v1922, %v1747
        %v1924 = vmax.f32 %v1923, %v1755
        %v1925 = vmax.f32 %v1924, %v1763
        %v1926 = vrot.slane %v1925, 4
        %v1927 = vmax.f32 %v1925, %v1926
        %v1928 = vrot.slane %v1927, 2
        %v1929 = vmax.f32 %v1927, %v1928
        %v1930 = vrot.slane %v1929, 1
        %v1931 = vmax.f32 %v1929, %v1930
        %p1932 = scmp.eq.s32.totalorder %s27, 0
        // Predicated region
        $region53: #{tpu_custom_call.1} parent=47 // pred_check
          %p1933 = pneg %p1932
        $region54: #{tpu_custom_call.1} parent=47 // pred_check_branch
          %1935 = sbr.rel (%p1933) target = $region56
        $region55: #{tpu_custom_call.1} parent=47 // pred_region
          %v1944 = vrot.slane %v1805, 7
          %v1945 = vrot.slane %v1826, 6
          %v1946 = vrot.slane %v1847, 5
          %v1947 = vrot.slane %v1868, 4
          %v1948 = vrot.slane %v1889, 3
          %v1949 = vrot.slane %v1910, 2
          %v1950 = vrot.slane %v1931, 1
          %vm1951 = vcmask 1040384
          %v1952 = vsel %vm1951, %v1784, %v1944
          %vm1953 = vcmask 1042434
          %v1954 = vsel %vm1953, %v1945, %v1946
          %vm1955 = vcmask 1041408
          %v1956 = vsel %vm1955, %v1952, %v1954
          %vm1957 = vcmask 1044484
          %v1958 = vsel %vm1957, %v1947, %v1948
          %vm1959 = vcmask 1046534
          %v1960 = vsel %vm1959, %v1949, %v1950
          %vm1961 = vcmask 1045508
          %v1962 = vsel %vm1961, %v1958, %v1960
          %vm1963 = vcmask 1043456
          %v1964 = vsel %vm1963, %v1956, %v1962
          %1966 = vst [vmem:[%s311] sm:$0xff] %v1964
        $region56: #{tpu_custom_call.1} parent=47 // pred_fallthru
          _
        %p1967 = scmp.gt.s32.totalorder %s27, 0
        // Predicated region
        $region57: #{tpu_custom_call.1} parent=47 // pred_check
          %p1968 = pneg %p1967
        $region58: #{tpu_custom_call.1} parent=47 // pred_check_branch
          %1970 = sbr.rel (%p1968) target = $region60
        $region59: #{tpu_custom_call.1} parent=47 // pred_region
          %v1971 = vld [vmem:[%s311] sm:$0xff]
          %v1980 = vrot.slane %v1805, 7
          %v1981 = vrot.slane %v1826, 6
          %v1982 = vrot.slane %v1847, 5
          %v1983 = vrot.slane %v1868, 4
          %v1984 = vrot.slane %v1889, 3
          %v1985 = vrot.slane %v1910, 2
          %v1986 = vrot.slane %v1931, 1
          %vm1987 = vcmask 1040384
          %v1988 = vsel %vm1987, %v1784, %v1980
          %vm1989 = vcmask 1042434
          %v1990 = vsel %vm1989, %v1981, %v1982
          %vm1991 = vcmask 1041408
          %v1992 = vsel %vm1991, %v1988, %v1990
          %vm1993 = vcmask 1044484
          %v1994 = vsel %vm1993, %v1983, %v1984
          %vm1995 = vcmask 1046534
          %v1996 = vsel %vm1995, %v1985, %v1986
          %vm1997 = vcmask 1045508
          %v1998 = vsel %vm1997, %v1994, %v1996
          %vm1999 = vcmask 1043456
          %v2000 = vsel %vm1999, %v1992, %v1998
          %v2002 = vmax.f32 %v1971, %v2000
          %2003 = vst [vmem:[%s311] sm:$0xff] %v2002
        $region60: #{tpu_custom_call.1} parent=47 // pred_fallthru
          _
        %s2004 = sand.u32 %s196, 1
        %s2005 = scalar_lea.sflag [#allocation4], %s2004
        %s2006 = sand.u32 %s196, 1
        %s2007 = smul.addr %s2006, 8
        %s2008 = scalar_lea.vmem [#allocation5], %s2007
        // Predicated region
        $region61: #{tpu_custom_call.1} parent=47 // pred_check
          %p2009 = pneg %p206
        $region62: #{tpu_custom_call.1} parent=47 // pred_check_branch
          %2011 = sbr.rel (%p2009) target = $region64
        $region63: #{tpu_custom_call.1} parent=47 // pred_region
          %2013 = vsyncadd %s2005, 0
          %s2014 = smul.addr %s26, 8
          %s2015 = scalar_lea.hbm %s7, %s2014
          %s2017 = sshll.u32 %s2008, 4
          %s2018 = int_to_ptr.vmem [resolvable:$true] %s2017
          %s2019 = sshll.u32 %s2015, 4
          %s2020 = int_to_ptr.hbm [resolvable:$true] %s2019
          %2022 = dma.vmem_to_hbm [thread:$0]  %s2018, 128, %s2020, %s2005
        $region64: #{tpu_custom_call.1} parent=47 // pred_fallthru
          _
      $region48: #{tpu_custom_call.1} parent=5 // pred_fallthru
        _
      %p2023 = scmp.le.s32.totalorder 2, %s17
      // Predicated region
      $region65: #{tpu_custom_call.1} parent=5 // pred_check
        %p2024 = pneg %p2023
      $region66: #{tpu_custom_call.1} parent=5 // pred_check_branch
        %2026 = sbr.rel (%p2024) target = $region68
      $region67: #{tpu_custom_call.1} parent=5 // pred_region
        %s2027 = ssub.s32 %s17, 2
        // Predicated region
        $region69: #{tpu_custom_call.1} parent=67 // pred_check
          %p2028 = pneg %p212
        $region70: #{tpu_custom_call.1} parent=67 // pred_check_branch
          %2030 = sbr.rel (%p2028) target = $region72
        $region71: #{tpu_custom_call.1} parent=67 // pred_region
          %s2031 = sand.u32 %s197, 1
          %s2032 = scalar_lea.sflag [#allocation4], %s2031
          %s2033 = sand.u32 %s197, 1
          %s2034 = smul.addr %s2033, 8
          %s2035 = scalar_lea.vmem [#allocation5], %s2034
          %2037 = dma.done %s2032, 128
        $region72: #{tpu_custom_call.1} parent=67 // pred_fallthru
          _
      $region68: #{tpu_custom_call.1} parent=5 // pred_fallthru
        _
    $region6: #{tpu_custom_call.1} parent=1 // loop_footer
      %s21 = sadd.s32 1, %s17
    $region7: #{tpu_custom_call.1} parent=1 // loop_footer_branch
      %16 = sbr.rel target = $region3
    $region8: #{tpu_custom_call.1} parent=1 // loop_exit
      _
    %2038 = vsyncpa [#allocation3], 1
    %s2039 = scalar_lea.sflag [#allocation3], 1
    %2040 = vsyncpa %s2039, 1
    %2041 = vsyncpa [#allocation4], 1
    %s2042 = scalar_lea.sflag [#allocation4], 1
    %2043 = vsyncpa %s2042, 1

</llo_original>
